<compile_context>
chip_gen: v7x
topology: tpu7x:2x2x1
jax: 0.10.0
libtpu: 0.0.40
codegen_flags: <defaults>
</compile_context>

<pallas_src>
import functools
import numpy as np
import jax
import jax.numpy as jnp
from jax import lax
from jax.experimental import pallas as pl
from jax.experimental.pallas import tpu as pltpu


def _cgr_kernel(x_ref, e_ref, pool_ref, w_ref, f_ref, out_ref, *,
                c, num_s, num_n, b_tile, xn_scale,
                r_g1, r_g2, r_ext, r_bg1, r_bn):
    f32 = jnp.float32
    bf16 = jnp.bfloat16

    # ---- resident parameters (already bf16 / f32; static slices, no casts) ----
    w_sp = w_ref[0:2 * num_s, 0:c]                  # (2S, C)  conv_state ++ conv_proj
    wg1 = w_ref[r_g1:r_g1 + num_n, 0:num_n]         # (N, N)   GCN conv1
    wg2 = w_ref[r_g2:r_g2 + num_s, 0:num_s]         # (S, S)   GCN conv2
    wext = w_ref[r_ext:r_ext + c, 0:num_s]          # (C, S)   conv_extend
    pool = pool_ref[...]                            # (N, HW)  pooling matrix^T (bf16)

    b_sp = f_ref[0:2 * num_s, 0:1]                  # (2S, 1)
    b_g1 = f_ref[r_bg1:r_bg1 + 1, 0:num_n]          # (1, N)
    bn_scale = f_ref[r_bn:r_bn + c, 0:1]            # (C, 1)
    bn_shift = f_ref[r_bn:r_bn + c, 1:2]            # (C, 1)

    # ---- stage 1 (per batch): 1x1 convs, edge gating, pooling, proj softmax, x_n ----
    x_n_list, prs_list = [], []
    for b in range(b_tile):
        xb = x_ref[b]                               # (C, HW) bf16
        eb = e_ref[b]                               # (S, HW) bf16 (already channel-softmaxed)

        xsp = jnp.dot(w_sp, xb, preferred_element_type=f32) + b_sp      # (2S, HW) f32
        xs_bf = xsp[:num_s].astype(bf16)            # conv_state(x)
        xp = xsp[num_s:]                            # conv_proj(x)
        xm_bf = (xp * eb.astype(f32)).astype(bf16)  # x_proj * softmax(edge)
        xp_bf = xp.astype(bf16)

        # AdaptiveAvgPool2d((mids+2,)^2) + [1:-1,1:-1] crop folded into `pool`: (S, N)
        x_anchor = lax.dot_general(xm_bf, pool, (((1,), (1,)), ((), ())),
                                   preferred_element_type=f32)
        # x_proj_reshaped = x_anchor^T @ x_proj -> (N, HW); softmax over the node axis
        pr = lax.dot_general(x_anchor.astype(bf16), xp_bf, (((0,), (0,)), ((), ())),
                             preferred_element_type=f32)
        pr = pr - jnp.max(pr, axis=0, keepdims=True)
        pre = jnp.exp(pr)
        prs = pre / jnp.sum(pre, axis=0, keepdims=True)                 # exact divide
        prs_bf = prs.astype(bf16)
        prs_list.append(prs_bf)

        # x_n_state = x_state @ x_proj_reshaped^T -> (S, N)
        x_n = lax.dot_general(xs_bf, prs_bf, (((1,), (1,)), ((), ())),
                              preferred_element_type=f32)
        if xn_scale is not None:                    # normalize=True path
            x_n = x_n * xn_scale
        x_n_list.append(x_n)

    # ---- stage 2: GCN, batched across the batch tile (tiny, stacked matmuls) ----
    # TODO(synk): reference GCN.forward unpacks x.size() as rank-4 but is handed a rank-3
    # tensor; the intended rank-3 Conv1d semantics are implemented here.
    x_n_all = x_n_list[0] if b_tile == 1 else jnp.concatenate(x_n_list, axis=0)  # (BT*S, N)
    h1 = lax.dot_general(x_n_all.astype(bf16), wg1, (((1,), (1,)), ((), ())),
                         preferred_element_type=f32) + b_g1            # conv1 over node axis
    hh = h1 - x_n_all                                                   # (BT*S, N) f32
    hh_l = hh if b_tile == 1 else jnp.concatenate(
        [hh[b * num_s:(b + 1) * num_s] for b in range(b_tile)], axis=1)  # (S, BT*N)
    g = jnp.maximum(jnp.dot(wg2, hh_l.astype(bf16),
                            preferred_element_type=f32), 0.0)            # conv2 + ReLU

    # ---- stage 3 (per batch): back-project + conv_extend + BN + residual, write-through ----
    for b in range(b_tile):
        g_b = g[:, b * num_n:(b + 1) * num_n].astype(bf16)               # (S, N)
        x_state = jnp.dot(g_b, prs_list[b], preferred_element_type=f32)  # (S, HW)
        y = jnp.dot(wext, x_state.astype(bf16), preferred_element_type=f32)  # (C, HW)
        # TODO(synk): BatchNorm2d implemented in eval (running-stats) mode; training-mode
        # batch statistics would need a cross-batch-tile reduction.
        y = y * bn_scale + bn_shift
        out_ref[b] = x_ref[b].astype(f32) + y


def _round_up(v, m):
    return ((v + m - 1) // m) * m


def _make_pool_matrix_t(h, w, mids):
    """AdaptiveAvgPool2d((mids+2, mids+2)) + [1:-1, 1:-1] crop, as (mids*mids, H*W)."""
    O = mids + 2
    P = np.zeros((mids * mids, h * w), dtype=np.float32)
    for oi in range(1, O - 1):
        i0 = (oi * h) // O
        i1 = -(-((oi + 1) * h) // O)              # ceil
        for oj in range(1, O - 1):
            j0 = (oj * w) // O
            j1 = -(-((oj + 1) * w) // O)
            k = (oi - 1) * mids + (oj - 1)
            inv_area = 1.0 / ((i1 - i0) * (j1 - j0))
            for i in range(i0, i1):
                P[k, i * w + j0:i * w + j1] = inv_area
    return P


def _vmem_capacity_bytes():
    try:
        return int(pltpu.get_tpu_info().vmem_capacity_bytes)
    except Exception:
        return 64 * 1024 * 1024                   # conservative (v7x physical VMEM)


def cgr_forward(x, edge, params, mids, normalize=False):
    n, c, h, w = x.shape
    num_s = params["w_state"].shape[0]
    num_n = mids * mids
    hw = h * w
    assert hw % 128 == 0, "H*W must be a multiple of 128 for this layout"
    assert max(c, num_s, num_n) <= 128, "packed-slab layout assumes small C/S/N"

    f32, bf16 = jnp.float32, jnp.bfloat16

    # --- edge: channel softmax on the LOW-RES edge (commutes with nearest upsample),
    #     then nearest upsample (PyTorch F.upsample default) and cast to bf16.
    e_ch, he, we = edge.shape[1], edge.shape[2], edge.shape[3]
    assert e_ch in (1, num_s)
    esm = jax.nn.softmax(edge.astype(f32), axis=1)
    if (he, we) != (h, w):
        ridx = (np.arange(h) * he) // h
        cidx = (np.arange(w) * we) // w
        esm = esm[:, :, ridx][:, :, :, cidx]
    if e_ch == 1:
        esm = jnp.broadcast_to(esm, (n, num_s, h, w))
    e_in = esm.reshape(n, num_s, hw).astype(bf16)

    # --- x in its natural (n, C, HW) layout, bf16 (no wrapper-side transpose).
    x_in = x.reshape(n, c, hw).astype(bf16)

    # --- constant pooling matrix (bf16).
    pool_t = jnp.asarray(_make_pool_matrix_t(h, w, mids), dtype=bf16)    # (N, HW)

    # --- bf16 weight slab (packed once host-side; no in-kernel casts).
    lanes_w = _round_up(max(c, num_s, num_n), 128)
    r_g1 = _round_up(2 * num_s, 16)
    r_g2 = _round_up(r_g1 + num_n, 16)
    r_ext = _round_up(r_g2 + num_s, 16)
    rows_w = _round_up(r_ext + c, 16)
    wslab = jnp.zeros((rows_w, lanes_w), bf16)
    wslab = wslab.at[0:num_s, :c].set(params["w_state"].astype(bf16))
    wslab = wslab.at[num_s:2 * num_s, :c].set(params["w_proj"].astype(bf16))
    wslab = wslab.at[r_g1:r_g1 + num_n, :num_n].set(params["w_g1"].astype(bf16))
    wslab = wslab.at[r_g2:r_g2 + num_s, :num_s].set(params["w_g2"].astype(bf16))
    wslab = wslab.at[r_ext:r_ext + c, :num_s].set(params["w_ext"].astype(bf16))

    # --- tiny f32 slab: biases + BatchNorm (eval / running-stats) affine.
    eps = 1e-5
    inv_std = params["bn_gamma"] / jnp.sqrt(params["bn_var"] + eps)
    bn_scale = inv_std
    bn_shift = params["bn_beta"] - params["bn_mean"] * inv_std
    lanes_f = max(128, _round_up(num_n, 128))
    r_bg1 = _round_up(2 * num_s, 8)
    r_bn = _round_up(r_bg1 + 1, 8)
    rows_f = _round_up(r_bn + c, 8)
    fslab = jnp.zeros((rows_f, lanes_f), f32)
    fslab = fslab.at[0:num_s, 0].set(params["b_state"])
    fslab = fslab.at[num_s:2 * num_s, 0].set(params["b_proj"])
    fslab = fslab.at[r_bg1, :num_n].set(params["b_g1"])
    fslab = fslab.at[r_bn:r_bn + c, 0].set(bn_scale)
    fslab = fslab.at[r_bn:r_bn + c, 1].set(bn_shift)

    # --- VMEM-budgeted batch tile; keep grid >= 2 so both v7x TensorCores get work.
    vmem_cap = _vmem_capacity_bytes()
    fixed_bytes = rows_w * lanes_w * 2 + rows_f * lanes_f * 4 + num_n * hw * 2
    io_b = hw * (c * 2 + num_s * 2 + c * 4)              # x(bf16) + edge(bf16) + out(f32)
    work_b = hw * (num_s * 4 * 5 + num_n * 8)            # per-batch f32/bf16 temporaries
    per_b = 2 * io_b + work_b                            # double-buffered I/O + live work
    budget = max(int(vmem_cap * 0.4) - fixed_bytes, per_b)
    cands = [d for d in range(1, n + 1)
             if n % d == 0 and (n < 2 or n // d >= 2) and d * per_b <= budget]
    b_tile = max(cands) if cands else 1
    grid = (n // b_tile,)

    kernel = functools.partial(
        _cgr_kernel,
        c=c, num_s=num_s, num_n=num_n, b_tile=b_tile,
        xn_scale=(1.0 / hw) if normalize else None,
        r_g1=r_g1, r_g2=r_g2, r_ext=r_ext, r_bg1=r_bg1, r_bn=r_bn)

    out = pl.pallas_call(
        kernel,
        out_shape=jax.ShapeDtypeStruct((n, c, hw), f32),
        grid_spec=pltpu.PrefetchScalarGridSpec(
            num_scalar_prefetch=0,
            grid=grid,
            in_specs=[
                pl.BlockSpec((b_tile, c, hw), lambda i: (i, 0, 0)),        # x (bf16)
                pl.BlockSpec((b_tile, num_s, hw), lambda i: (i, 0, 0)),    # softmax(edge) (bf16)
                pl.BlockSpec((num_n, hw), lambda i: (0, 0)),               # pooling matrix
                pl.BlockSpec((rows_w, lanes_w), lambda i: (0, 0)),         # bf16 weight slab
                pl.BlockSpec((rows_f, lanes_f), lambda i: (0, 0)),         # f32 bias/BN slab
            ],
            out_specs=pl.BlockSpec((b_tile, c, hw), lambda i: (i, 0, 0)),
        ),
        compiler_params=pltpu.CompilerParams(
            dimension_semantics=("parallel",),
            vmem_limit_bytes=int(vmem_cap * 0.75)),
    )(x_in, e_in, pool_t, wslab, fslab)

    return out.reshape(n, c, h, w)


if __name__ == "__main__":
    # Module config: num_in=8, plane_mid=8 (num_s), mids=2 (num_n=4), normalize=False.
    num_in, num_s, mids = 8, 8, 2
    num_n = mids * mids
    n, h, w = 4, 16, 16
    he, we = 8, 8   # edge fed at half resolution; nearest upsample brings it to (h, w)

    key = jax.random.PRNGKey(0)
    ks = jax.random.split(key, 12)
    f32 = jnp.float32

    x = jax.random.normal(ks[0], (n, num_in, h, w), dtype=f32)
    # edge has num_s channels so softmax(edge, dim=1) is non-trivial and the
    # x_proj * edge elementwise product needs no broadcasting.
    edge = jax.random.normal(ks[1], (n, num_s, he, we), dtype=f32)

    params = {
        "w_state": 0.2 * jax.random.normal(ks[2], (num_s, num_in), dtype=f32),
        "b_state": 0.1 * jax.random.normal(ks[3], (num_s,), dtype=f32),
        "w_proj":  0.2 * jax.random.normal(ks[4], (num_s, num_in), dtype=f32),
        "b_proj":  0.1 * jax.random.normal(ks[5], (num_s,), dtype=f32),
        "w_g1":    0.2 * jax.random.normal(ks[6], (num_n, num_n), dtype=f32),
        "b_g1":    0.1 * jax.random.normal(ks[7], (num_n,), dtype=f32),
        "w_g2":    0.2 * jax.random.normal(ks[8], (num_s, num_s), dtype=f32),
        "w_ext":   0.2 * jax.random.normal(ks[9], (num_in, num_s), dtype=f32),
        "bn_gamma": 1.0 + 0.1 * jax.random.normal(ks[10], (num_in,), dtype=f32),
        "bn_beta":  0.1 * jax.random.normal(ks[11], (num_in,), dtype=f32),
        "bn_mean":  jnp.zeros((num_in,), dtype=f32),   # PyTorch default running stats
        "bn_var":   jnp.ones((num_in,), dtype=f32),
    }

    out = cgr_forward(x, edge, params, mids, normalize=False)
    out = jax.block_until_ready(out)
    assert out.shape == (n, num_in, h, w)
    assert bool(jnp.all(jnp.isfinite(out)))
    print("KERNEL_OK")
</pallas_src>

<mosaic_0001>
module attributes {stable_mosaic.version = 11 : i64} {
  func.func @_cgr_kernel(%arg0: i32, %arg1: memref<2x8x256xbf16, #tpu.memory_space<vmem>>, %arg2: memref<2x8x256xbf16, #tpu.memory_space<vmem>>, %arg3: memref<4x256xbf16, #tpu.memory_space<vmem>>, %arg4: memref<64x128xbf16, #tpu.memory_space<vmem>>, %arg5: memref<32x128xf32, #tpu.memory_space<vmem>>, %arg6: memref<2x8x256xf32, #tpu.memory_space<vmem>>) attributes {dimension_semantics = [#tpu.dimension_semantics<parallel>], iteration_bounds = array<i64: 2>, scalar_prefetch = 0 : i64, scratch_operands = 0 : i64, tpu.core_type = #tpu.core_type<tc>, window_params = [{transform_indices = @transform_0, window_bounds = array<i64: 2, 8, 256>}, {transform_indices = @transform_1, window_bounds = array<i64: 2, 8, 256>}, {pipeline_mode = #tpu.pipeline_mode<synchronous>, transform_indices = @transform_2, window_bounds = array<i64: 4, 256>}, {pipeline_mode = #tpu.pipeline_mode<synchronous>, transform_indices = @transform_3, window_bounds = array<i64: 64, 128>}, {pipeline_mode = #tpu.pipeline_mode<synchronous>, transform_indices = @transform_4, window_bounds = array<i64: 32, 128>}, {transform_indices = @transform_5, window_bounds = array<i64: 2, 8, 256>}]} {
    %c0 = arith.constant 0 : index
    %c0_0 = arith.constant 0 : index
    %0 = vector.load %arg4[%c0, %c0_0] : memref<64x128xbf16, #tpu.memory_space<vmem>>, vector<16x8xbf16>
    %c16 = arith.constant 16 : index
    %c0_1 = arith.constant 0 : index
    %1 = vector.load %arg4[%c16, %c0_1] : memref<64x128xbf16, #tpu.memory_space<vmem>>, vector<4x4xbf16>
    %c32 = arith.constant 32 : index
    %c0_2 = arith.constant 0 : index
    %2 = vector.load %arg4[%c32, %c0_2] : memref<64x128xbf16, #tpu.memory_space<vmem>>, vector<8x8xbf16>
    %c48 = arith.constant 48 : index
    %c0_3 = arith.constant 0 : index
    %3 = vector.load %arg4[%c48, %c0_3] : memref<64x128xbf16, #tpu.memory_space<vmem>>, vector<8x8xbf16>
    %c0_4 = arith.constant 0 : index
    %c0_5 = arith.constant 0 : index
    %4 = vector.load %arg3[%c0_4, %c0_5] : memref<4x256xbf16, #tpu.memory_space<vmem>>, vector<4x256xbf16>
    %c0_6 = arith.constant 0 : index
    %c0_7 = arith.constant 0 : index
    %5 = vector.load %arg5[%c0_6, %c0_7] : memref<32x128xf32, #tpu.memory_space<vmem>>, vector<16x1xf32>
    %c16_8 = arith.constant 16 : index
    %c0_9 = arith.constant 0 : index
    %6 = vector.load %arg5[%c16_8, %c0_9] : memref<32x128xf32, #tpu.memory_space<vmem>>, vector<1x4xf32>
    %c24 = arith.constant 24 : index
    %c0_10 = arith.constant 0 : index
    %7 = vector.load %arg5[%c24, %c0_10] : memref<32x128xf32, #tpu.memory_space<vmem>>, vector<8x1xf32>
    %c24_11 = arith.constant 24 : index
    %c1 = arith.constant 1 : index
    %8 = vector.load %arg5[%c24_11, %c1] : memref<32x128xf32, #tpu.memory_space<vmem>>, vector<8x1xf32>
    %c0_12 = arith.constant 0 : index
    %c0_13 = arith.constant 0 : index
    %c0_14 = arith.constant 0 : index
    %9 = vector.load %arg1[%c0_12, %c0_13, %c0_14] : memref<2x8x256xbf16, #tpu.memory_space<vmem>>, vector<1x8x256xbf16>
    %10 = vector.shape_cast %9 : vector<1x8x256xbf16> to vector<8x256xbf16>
    %c0_15 = arith.constant 0 : index
    %c0_16 = arith.constant 0 : index
    %c0_17 = arith.constant 0 : index
    %11 = vector.load %arg2[%c0_15, %c0_16, %c0_17] : memref<2x8x256xbf16, #tpu.memory_space<vmem>>, vector<1x8x256xbf16>
    %12 = vector.shape_cast %11 : vector<1x8x256xbf16> to vector<8x256xbf16>
    %cst = arith.constant dense<0.000000e+00> : vector<16x256xf32>
    %13 = tpu.matmul %0, %10, %cst {dimension_numbers = #tpu.dot_dimension_numbers<[1], [0], [0], [1], [0, 0, 1, 1], [], []>} : vector<16x8xbf16>, vector<8x256xbf16>, vector<16x256xf32> -> vector<16x256xf32>
    %14 = vector.broadcast %5 : vector<16x1xf32> to vector<16x256xf32>
    %15 = arith.addf %13, %14 : vector<16x256xf32>
    %16 = vector.extract_strided_slice %15 {offsets = [0, 0], sizes = [8, 256], strides = [1, 1]} : vector<16x256xf32> to vector<8x256xf32>
    %17 = arith.truncf %16 : vector<8x256xf32> to vector<8x256xbf16>
    %18 = vector.extract_strided_slice %15 {offsets = [8, 0], sizes = [8, 256], strides = [1, 1]} : vector<16x256xf32> to vector<8x256xf32>
    %19 = arith.extf %12 : vector<8x256xbf16> to vector<8x256xf32>
    %20 = arith.mulf %18, %19 : vector<8x256xf32>
    %21 = arith.truncf %20 : vector<8x256xf32> to vector<8x256xbf16>
    %22 = arith.truncf %18 : vector<8x256xf32> to vector<8x256xbf16>
    %cst_18 = arith.constant dense<0.000000e+00> : vector<8x4xf32>
    %23 = tpu.matmul %21, %4, %cst_18 {dimension_numbers = #tpu.dot_dimension_numbers<[1], [1], [0], [0], [0, 0, 1, 0], [], []>} : vector<8x256xbf16>, vector<4x256xbf16>, vector<8x4xf32> -> vector<8x4xf32>
    %24 = arith.truncf %23 : vector<8x4xf32> to vector<8x4xbf16>
    %cst_19 = arith.constant dense<0.000000e+00> : vector<4x256xf32>
    %25 = tpu.matmul %24, %22, %cst_19 {dimension_numbers = #tpu.dot_dimension_numbers<[0], [0], [1], [1], [0, 1, 1, 1], [], []>} : vector<8x4xbf16>, vector<8x256xbf16>, vector<4x256xf32> -> vector<4x256xf32>
    %cst_20 = arith.constant dense<0xFF800000> : vector<256xf32>
    %26 = vector.multi_reduction <maximumf>, %25, %cst_20 [0] : vector<4x256xf32> to vector<256xf32>
    %27 = vector.shape_cast %26 : vector<256xf32> to vector<1x256xf32>
    %28 = vector.broadcast %27 : vector<1x256xf32> to vector<4x256xf32>
    %29 = arith.subf %25, %28 : vector<4x256xf32>
    %30 = math.exp %29 : vector<4x256xf32>
    %cst_21 = arith.constant dense<0.000000e+00> : vector<256xf32>
    %31 = vector.multi_reduction <add>, %30, %cst_21 [0] : vector<4x256xf32> to vector<256xf32>
    %32 = vector.shape_cast %31 : vector<256xf32> to vector<1x256xf32>
    %33 = vector.broadcast %32 : vector<1x256xf32> to vector<4x256xf32>
    %34 = arith.divf %30, %33 : vector<4x256xf32>
    %35 = arith.truncf %34 : vector<4x256xf32> to vector<4x256xbf16>
    %cst_22 = arith.constant dense<0.000000e+00> : vector<8x4xf32>
    %36 = tpu.matmul %17, %35, %cst_22 {dimension_numbers = #tpu.dot_dimension_numbers<[1], [1], [0], [0], [0, 0, 1, 0], [], []>} : vector<8x256xbf16>, vector<4x256xbf16>, vector<8x4xf32> -> vector<8x4xf32>
    %c1_23 = arith.constant 1 : index
    %c0_24 = arith.constant 0 : index
    %c0_25 = arith.constant 0 : index
    %37 = vector.load %arg1[%c1_23, %c0_24, %c0_25] : memref<2x8x256xbf16, #tpu.memory_space<vmem>>, vector<1x8x256xbf16>
    %38 = vector.shape_cast %37 : vector<1x8x256xbf16> to vector<8x256xbf16>
    %c1_26 = arith.constant 1 : index
    %c0_27 = arith.constant 0 : index
    %c0_28 = arith.constant 0 : index
    %39 = vector.load %arg2[%c1_26, %c0_27, %c0_28] : memref<2x8x256xbf16, #tpu.memory_space<vmem>>, vector<1x8x256xbf16>
    %40 = vector.shape_cast %39 : vector<1x8x256xbf16> to vector<8x256xbf16>
    %cst_29 = arith.constant dense<0.000000e+00> : vector<16x256xf32>
    %41 = tpu.matmul %0, %38, %cst_29 {dimension_numbers = #tpu.dot_dimension_numbers<[1], [0], [0], [1], [0, 0, 1, 1], [], []>} : vector<16x8xbf16>, vector<8x256xbf16>, vector<16x256xf32> -> vector<16x256xf32>
    %42 = vector.broadcast %5 : vector<16x1xf32> to vector<16x256xf32>
    %43 = arith.addf %41, %42 : vector<16x256xf32>
    %44 = vector.extract_strided_slice %43 {offsets = [0, 0], sizes = [8, 256], strides = [1, 1]} : vector<16x256xf32> to vector<8x256xf32>
    %45 = arith.truncf %44 : vector<8x256xf32> to vector<8x256xbf16>
    %46 = vector.extract_strided_slice %43 {offsets = [8, 0], sizes = [8, 256], strides = [1, 1]} : vector<16x256xf32> to vector<8x256xf32>
    %47 = arith.extf %40 : vector<8x256xbf16> to vector<8x256xf32>
    %48 = arith.mulf %46, %47 : vector<8x256xf32>
    %49 = arith.truncf %48 : vector<8x256xf32> to vector<8x256xbf16>
    %50 = arith.truncf %46 : vector<8x256xf32> to vector<8x256xbf16>
    %cst_30 = arith.constant dense<0.000000e+00> : vector<8x4xf32>
    %51 = tpu.matmul %49, %4, %cst_30 {dimension_numbers = #tpu.dot_dimension_numbers<[1], [1], [0], [0], [0, 0, 1, 0], [], []>} : vector<8x256xbf16>, vector<4x256xbf16>, vector<8x4xf32> -> vector<8x4xf32>
    %52 = arith.truncf %51 : vector<8x4xf32> to vector<8x4xbf16>
    %cst_31 = arith.constant dense<0.000000e+00> : vector<4x256xf32>
    %53 = tpu.matmul %52, %50, %cst_31 {dimension_numbers = #tpu.dot_dimension_numbers<[0], [0], [1], [1], [0, 1, 1, 1], [], []>} : vector<8x4xbf16>, vector<8x256xbf16>, vector<4x256xf32> -> vector<4x256xf32>
    %cst_32 = arith.constant dense<0xFF800000> : vector<256xf32>
    %54 = vector.multi_reduction <maximumf>, %53, %cst_32 [0] : vector<4x256xf32> to vector<256xf32>
    %55 = vector.shape_cast %54 : vector<256xf32> to vector<1x256xf32>
    %56 = vector.broadcast %55 : vector<1x256xf32> to vector<4x256xf32>
    %57 = arith.subf %53, %56 : vector<4x256xf32>
    %58 = math.exp %57 : vector<4x256xf32>
    %cst_33 = arith.constant dense<0.000000e+00> : vector<256xf32>
    %59 = vector.multi_reduction <add>, %58, %cst_33 [0] : vector<4x256xf32> to vector<256xf32>
    %60 = vector.shape_cast %59 : vector<256xf32> to vector<1x256xf32>
    %61 = vector.broadcast %60 : vector<1x256xf32> to vector<4x256xf32>
    %62 = arith.divf %58, %61 : vector<4x256xf32>
    %63 = arith.truncf %62 : vector<4x256xf32> to vector<4x256xbf16>
    %cst_34 = arith.constant dense<0.000000e+00> : vector<8x4xf32>
    %64 = tpu.matmul %45, %63, %cst_34 {dimension_numbers = #tpu.dot_dimension_numbers<[1], [1], [0], [0], [0, 0, 1, 0], [], []>} : vector<8x256xbf16>, vector<4x256xbf16>, vector<8x4xf32> -> vector<8x4xf32>
    %65 = tpu.concatenate %36, %64 in 0 : vector<8x4xf32>, vector<8x4xf32> -> vector<16x4xf32>
    %66 = arith.truncf %65 : vector<16x4xf32> to vector<16x4xbf16>
    %cst_35 = arith.constant dense<0.000000e+00> : vector<16x4xf32>
    %67 = tpu.matmul %66, %1, %cst_35 {dimension_numbers = #tpu.dot_dimension_numbers<[1], [1], [0], [0], [0, 0, 1, 0], [], []>} : vector<16x4xbf16>, vector<4x4xbf16>, vector<16x4xf32> -> vector<16x4xf32>
    %68 = vector.broadcast %6 : vector<1x4xf32> to vector<16x4xf32>
    %69 = arith.addf %67, %68 : vector<16x4xf32>
    %70 = arith.subf %69, %65 : vector<16x4xf32>
    %71 = vector.extract_strided_slice %70 {offsets = [0, 0], sizes = [8, 4], strides = [1, 1]} : vector<16x4xf32> to vector<8x4xf32>
    %72 = vector.extract_strided_slice %70 {offsets = [8, 0], sizes = [8, 4], strides = [1, 1]} : vector<16x4xf32> to vector<8x4xf32>
    %73 = tpu.concatenate %71, %72 in 1 : vector<8x4xf32>, vector<8x4xf32> -> vector<8x8xf32>
    %74 = arith.truncf %73 : vector<8x8xf32> to vector<8x8xbf16>
    %cst_36 = arith.constant dense<0.000000e+00> : vector<8x8xf32>
    %75 = tpu.matmul %2, %74, %cst_36 {dimension_numbers = #tpu.dot_dimension_numbers<[1], [0], [0], [1], [0, 0, 1, 1], [], []>} : vector<8x8xbf16>, vector<8x8xbf16>, vector<8x8xf32> -> vector<8x8xf32>
    %cst_37 = arith.constant 0.000000e+00 : f32
    %76 = vector.broadcast %cst_37 : f32 to vector<8x8xf32>
    %77 = arith.maximumf %75, %76 : vector<8x8xf32>
    %78 = vector.extract_strided_slice %77 {offsets = [0, 0], sizes = [8, 4], strides = [1, 1]} : vector<8x8xf32> to vector<8x4xf32>
    %79 = arith.truncf %78 : vector<8x4xf32> to vector<8x4xbf16>
    %cst_38 = arith.constant dense<0.000000e+00> : vector<8x256xf32>
    %80 = tpu.matmul %79, %35, %cst_38 {dimension_numbers = #tpu.dot_dimension_numbers<[1], [0], [0], [1], [0, 0, 1, 1], [], []>} : vector<8x4xbf16>, vector<4x256xbf16>, vector<8x256xf32> -> vector<8x256xf32>
    %81 = arith.truncf %80 : vector<8x256xf32> to vector<8x256xbf16>
    %cst_39 = arith.constant dense<0.000000e+00> : vector<8x256xf32>
    %82 = tpu.matmul %3, %81, %cst_39 {dimension_numbers = #tpu.dot_dimension_numbers<[1], [0], [0], [1], [0, 0, 1, 1], [], []>} : vector<8x8xbf16>, vector<8x256xbf16>, vector<8x256xf32> -> vector<8x256xf32>
    %83 = vector.broadcast %7 : vector<8x1xf32> to vector<8x256xf32>
    %84 = arith.mulf %82, %83 : vector<8x256xf32>
    %85 = vector.broadcast %8 : vector<8x1xf32> to vector<8x256xf32>
    %86 = arith.addf %84, %85 : vector<8x256xf32>
    %c0_40 = arith.constant 0 : index
    %c0_41 = arith.constant 0 : index
    %c0_42 = arith.constant 0 : index
    %87 = vector.load %arg1[%c0_40, %c0_41, %c0_42] : memref<2x8x256xbf16, #tpu.memory_space<vmem>>, vector<1x8x256xbf16>
    %88 = vector.shape_cast %87 : vector<1x8x256xbf16> to vector<8x256xbf16>
    %89 = arith.extf %88 : vector<8x256xbf16> to vector<8x256xf32>
    %90 = arith.addf %89, %86 : vector<8x256xf32>
    %c0_43 = arith.constant 0 : index
    %c0_44 = arith.constant 0 : index
    %c0_45 = arith.constant 0 : index
    %91 = vector.load %arg6[%c0_43, %c0_44, %c0_45] : memref<2x8x256xf32, #tpu.memory_space<vmem>>, vector<1x8x256xf32>
    %92 = vector.shape_cast %91 : vector<1x8x256xf32> to vector<8x256xf32>
    %93 = vector.shape_cast %90 : vector<8x256xf32> to vector<1x8x256xf32>
    tpu.vector_store %arg6[%c0_43, %c0_44, %c0_45], %93 {strides = array<i32>} : memref<2x8x256xf32, #tpu.memory_space<vmem>>, vector<1x8x256xf32>,
    %94 = vector.extract_strided_slice %77 {offsets = [0, 4], sizes = [8, 4], strides = [1, 1]} : vector<8x8xf32> to vector<8x4xf32>
    %95 = arith.truncf %94 : vector<8x4xf32> to vector<8x4xbf16>
    %cst_46 = arith.constant dense<0.000000e+00> : vector<8x256xf32>
    %96 = tpu.matmul %95, %63, %cst_46 {dimension_numbers = #tpu.dot_dimension_numbers<[1], [0], [0], [1], [0, 0, 1, 1], [], []>} : vector<8x4xbf16>, vector<4x256xbf16>, vector<8x256xf32> -> vector<8x256xf32>
    %97 = arith.truncf %96 : vector<8x256xf32> to vector<8x256xbf16>
    %cst_47 = arith.constant dense<0.000000e+00> : vector<8x256xf32>
    %98 = tpu.matmul %3, %97, %cst_47 {dimension_numbers = #tpu.dot_dimension_numbers<[1], [0], [0], [1], [0, 0, 1, 1], [], []>} : vector<8x8xbf16>, vector<8x256xbf16>, vector<8x256xf32> -> vector<8x256xf32>
    %99 = vector.broadcast %7 : vector<8x1xf32> to vector<8x256xf32>
    %100 = arith.mulf %98, %99 : vector<8x256xf32>
    %101 = vector.broadcast %8 : vector<8x1xf32> to vector<8x256xf32>
    %102 = arith.addf %100, %101 : vector<8x256xf32>
    %c1_48 = arith.constant 1 : index
    %c0_49 = arith.constant 0 : index
    %c0_50 = arith.constant 0 : index
    %103 = vector.load %arg1[%c1_48, %c0_49, %c0_50] : memref<2x8x256xbf16, #tpu.memory_space<vmem>>, vector<1x8x256xbf16>
    %104 = vector.shape_cast %103 : vector<1x8x256xbf16> to vector<8x256xbf16>
    %105 = arith.extf %104 : vector<8x256xbf16> to vector<8x256xf32>
    %106 = arith.addf %105, %102 : vector<8x256xf32>
    %c1_51 = arith.constant 1 : index
    %c0_52 = arith.constant 0 : index
    %c0_53 = arith.constant 0 : index
    %107 = vector.load %arg6[%c1_51, %c0_52, %c0_53] : memref<2x8x256xf32, #tpu.memory_space<vmem>>, vector<1x8x256xf32>
    %108 = vector.shape_cast %107 : vector<1x8x256xf32> to vector<8x256xf32>
    %109 = vector.shape_cast %106 : vector<8x256xf32> to vector<1x8x256xf32>
    tpu.vector_store %arg6[%c1_51, %c0_52, %c0_53], %109 {strides = array<i32>} : memref<2x8x256xf32, #tpu.memory_space<vmem>>, vector<1x8x256xf32>,
    return
  }
  func.func @transform_0(%arg0: i32) -> (i32, i32, i32) {
    %c0_i32 = arith.constant 0 : i32
    %c0_i32_0 = arith.constant 0 : i32
    %c0_i32_1 = arith.constant 0 : i32
    return %arg0, %c0_i32, %c0_i32_0 : i32, i32, i32
  }
  func.func @transform_1(%arg0: i32) -> (i32, i32, i32) {
    %c0_i32 = arith.constant 0 : i32
    %c0_i32_0 = arith.constant 0 : i32
    %c0_i32_1 = arith.constant 0 : i32
    return %arg0, %c0_i32, %c0_i32_0 : i32, i32, i32
  }
  func.func @transform_2(%arg0: i32) -> (i32, i32) {
    %c0_i32 = arith.constant 0 : i32
    %c0_i32_0 = arith.constant 0 : i32
    %c0_i32_1 = arith.constant 0 : i32
    return %c0_i32, %c0_i32_0 : i32, i32
  }
  func.func @transform_3(%arg0: i32) -> (i32, i32) {
    %c0_i32 = arith.constant 0 : i32
    %c0_i32_0 = arith.constant 0 : i32
    %c0_i32_1 = arith.constant 0 : i32
    return %c0_i32, %c0_i32_0 : i32, i32
  }
  func.func @transform_4(%arg0: i32) -> (i32, i32) {
    %c0_i32 = arith.constant 0 : i32
    %c0_i32_0 = arith.constant 0 : i32
    %c0_i32_1 = arith.constant 0 : i32
    return %c0_i32, %c0_i32_0 : i32, i32
  }
  func.func @transform_5(%arg0: i32) -> (i32, i32, i32) {
    %c0_i32 = arith.constant 0 : i32
    %c0_i32_0 = arith.constant 0 : i32
    %c0_i32_1 = arith.constant 0 : i32
    return %arg0, %c0_i32, %c0_i32_0 : i32, i32, i32
  }
}

</mosaic_0001>

<llo_original>
// kernel: tpu_custom_call.1
$region0: #{tpu_custom_call.1}
  #allocation0 [shape = 'u32[]', space=smem, size = 0x4, offset = 0x4, fixed_abs, tag = 'smem constant byte address 0x4 - core index']
  #allocation1 [shape = 'u32[144,128]{1,0:T(1,128)}', space=vmem, size = 0x12000, scoped, tag = 'internal scratch']
  %s0 = inlined_call_operand.hbm [shape: bf16[4,8,256], index: 0, kind: input, shape index: {}]
  %s1 = inlined_call_operand.hbm [shape: bf16[4,8,256], index: 1, kind: input, shape index: {}]
  %s2 = inlined_call_operand.vmem [shape: bf16[4,256], index: 2, kind: input, shape index: {}]
  %s3 = inlined_call_operand.hbm [shape: bf16[64,128], index: 3, kind: input, shape index: {}]
  %s4 = inlined_call_operand.hbm [shape: f32[32,128], index: 4, kind: input, shape index: {}]
  %s5 = inlined_call_operand.hbm [shape: f32[4,8,256], index: 5, kind: output, shape index: {}]
  %s6 = sld [smem:[#allocation0]]
  $region69: #{tpu_custom_call.1} parent=0
    _
  %s8 = ssub.s32 1, %s6
  %s9 = scalar_select 0, %s8, %s6
  $region1: #{tpu_custom_call.1} parent=0
    #allocation2 [shape = 'u8[16384]{0}', space=vmem, size = 0x4000, scoped, tag = 'input window, operand 0']
    #allocation3 [shape = 's32[2]{0}', space=sflag, size = 0x8, scoped, tag = 'scoped memory for tpu_custom_call.1']
    #allocation4 [shape = 's32[2]{0}', space=sflag, size = 0x8, scoped, tag = 'scoped memory for tpu_custom_call.1']
    #allocation5 [shape = 'u8[16384]{0}', space=vmem, size = 0x4000, scoped, tag = 'input window, operand 1']
    #allocation6 [shape = 's32[2]{0}', space=sflag, size = 0x8, scoped, tag = 'scoped memory for tpu_custom_call.1']
    #allocation7 [shape = 'u8[16384]{0}', space=vmem, size = 0x4000, scoped, tag = 'input window, operand 3, single buffered']
    #allocation8 [shape = 'u8[16384]{0}', space=vmem, size = 0x4000, scoped, tag = 'input window, operand 4, single buffered']
    #allocation9 [shape = 's32[1]{0}', space=sflag, size = 0x4, scoped, tag = 'scoped memory for tpu_custom_call.1']
    #allocation10 [shape = 'u8[32768]{0}', space=vmem, size = 0x8000, scoped, tag = 'output window, operand 0']
    %10 = vsyncpa [#allocation3], 0
    %s11 = scalar_lea.sflag [#allocation3], 1
    %12 = vsyncpa %s11, 0
    %13 = vsyncpa [#allocation6], 0
    %s14 = scalar_lea.sflag [#allocation6], 1
    %15 = vsyncpa %s14, 0
    %16 = vsyncpa [#allocation9], 0
    %17 = vsyncpa [#allocation4], 0
    %s18 = scalar_lea.sflag [#allocation4], 1
    %19 = vsyncpa %s18, 0
    loop: start=0, step=1, limit=4
    $region2: #{tpu_custom_call.1} parent=1 // loop_pre_header
      _
    $region3: #{tpu_custom_call.1} parent=1 // loop_header
      %s21 = sphi 0, %s25
      %p22 = scmp.ge.s32.totalorder %s21, 4
      %s31 = sphi 0, %s33
      %s34 = sphi 0, %s31
      %s35 = sphi 0, %s34
      %s51 = sphi 0, %s35
      %s57 = sphi 0, %s59
      %s60 = sphi 0, %s57
      %s61 = sphi 0, %s60
      %s77 = sphi 0, %s61
      %s81 = sphi 0, %s81
      %s83 = sphi 0, %s81
      %s84 = sphi 0, %s83
      %s98 = sphi 0, %s84
      %s102 = sphi 0, %s102
      %s104 = sphi 0, %s102
      %s105 = sphi 0, %s104
      %s119 = sphi 0, %s105
      %s123 = sphi 0, %s123
      %s125 = sphi 0, %s123
      %s126 = sphi 0, %s125
      %s140 = sphi 0, %s126
      %s146 = sphi 0, %s148
      %s149 = sphi 0, %s146
      %s150 = sphi 0, %s149
      %s166 = sphi 0, %s150
    $region4: #{tpu_custom_call.1} parent=1 // loop_header_branch
      %24 = sbr.rel (%p22) target = $region8
    $region5: #{tpu_custom_call.1} parent=1 // loop_body
      %s26 = ssub.s32 %s21, 1
      %s27 = ssub.s32 %s21, 2
      %s28 = sadd.s32 %s21, 1
      %s29 = ssub.s32 %s21, %s28
      %p30 = scmp.eq.s32.totalorder %s29, 0
      %s32 = sadd.s32 %s31, 1
      %s33 = scalar_select %p30, %s31, %s32
      %p36 = pneg %p30
      %p37 = scmp.eq.s32.totalorder %s21, 1
      %p38 = por %p36, %p37
      %p39 = scmp.ne.s32.totalorder %s31, %s34
      %p40 = scmp.eq.s32.totalorder %s21, 0
      %p41 = por %p39, %p40
      %p42 = scmp.ne.s32.totalorder %s31, %s34
      %p43 = scmp.eq.s32.totalorder %s26, 1
      %p44 = por %p42, %p43
      %p45 = scmp.ne.s32.totalorder %s34, %s35
      %p46 = scmp.eq.s32.totalorder %s26, 0
      %p47 = por %p45, %p46
      %p48 = scmp.ne.s32.totalorder %s34, %s35
      %p49 = scmp.eq.s32.totalorder %s27, 1
      %p50 = por %p48, %p49
      %p52 = scmp.ne.s32.totalorder %s35, %s51
      %p53 = scmp.eq.s32.totalorder %s27, 0
      %p54 = por %p52, %p53
      %s55 = ssub.s32 %s21, %s28
      %p56 = scmp.eq.s32.totalorder %s55, 0
      %s58 = sadd.s32 %s57, 1
      %s59 = scalar_select %p56, %s57, %s58
      %p62 = pneg %p56
      %p63 = scmp.eq.s32.totalorder %s21, 1
      %p64 = por %p62, %p63
      %p65 = scmp.ne.s32.totalorder %s57, %s60
      %p66 = scmp.eq.s32.totalorder %s21, 0
      %p67 = por %p65, %p66
      %p68 = scmp.ne.s32.totalorder %s57, %s60
      %p69 = scmp.eq.s32.totalorder %s26, 1
      %p70 = por %p68, %p69
      %p71 = scmp.ne.s32.totalorder %s60, %s61
      %p72 = scmp.eq.s32.totalorder %s26, 0
      %p73 = por %p71, %p72
      %p74 = scmp.ne.s32.totalorder %s60, %s61
      %p75 = scmp.eq.s32.totalorder %s27, 1
      %p76 = por %p74, %p75
      %p78 = scmp.ne.s32.totalorder %s61, %s77
      %p79 = scmp.eq.s32.totalorder %s27, 0
      %p80 = por %p78, %p79
      %s82 = sadd.s32 %s81, 1
      %p85 = scmp.eq.s32.totalorder %s21, 1
      %p86 = scmp.ne.s32.totalorder %s81, %s83
      %p87 = scmp.eq.s32.totalorder %s21, 0
      %p88 = por %p86, %p87
      %p89 = scmp.ne.s32.totalorder %s81, %s83
      %p90 = scmp.eq.s32.totalorder %s26, 1
      %p91 = por %p89, %p90
      %p92 = scmp.ne.s32.totalorder %s83, %s84
      %p93 = scmp.eq.s32.totalorder %s26, 0
      %p94 = por %p92, %p93
      %p95 = scmp.ne.s32.totalorder %s83, %s84
      %p96 = scmp.eq.s32.totalorder %s27, 1
      %p97 = por %p95, %p96
      %p99 = scmp.ne.s32.totalorder %s84, %s98
      %p100 = scmp.eq.s32.totalorder %s27, 0
      %p101 = por %p99, %p100
      %s103 = sadd.s32 %s102, 1
      %p106 = scmp.eq.s32.totalorder %s21, 1
      %p107 = scmp.ne.s32.totalorder %s102, %s104
      %p108 = scmp.eq.s32.totalorder %s21, 0
      %p109 = por %p107, %p108
      %p110 = scmp.ne.s32.totalorder %s102, %s104
      %p111 = scmp.eq.s32.totalorder %s26, 1
      %p112 = por %p110, %p111
      %p113 = scmp.ne.s32.totalorder %s104, %s105
      %p114 = scmp.eq.s32.totalorder %s26, 0
      %p115 = por %p113, %p114
      %p116 = scmp.ne.s32.totalorder %s104, %s105
      %p117 = scmp.eq.s32.totalorder %s27, 1
      %p118 = por %p116, %p117
      %p120 = scmp.ne.s32.totalorder %s105, %s119
      %p121 = scmp.eq.s32.totalorder %s27, 0
      %p122 = por %p120, %p121
      %s124 = sadd.s32 %s123, 1
      %p127 = scmp.eq.s32.totalorder %s21, 1
      %p128 = scmp.ne.s32.totalorder %s123, %s125
      %p129 = scmp.eq.s32.totalorder %s21, 0
      %p130 = por %p128, %p129
      %p131 = scmp.ne.s32.totalorder %s123, %s125
      %p132 = scmp.eq.s32.totalorder %s26, 1
      %p133 = por %p131, %p132
      %p134 = scmp.ne.s32.totalorder %s125, %s126
      %p135 = scmp.eq.s32.totalorder %s26, 0
      %p136 = por %p134, %p135
      %p137 = scmp.ne.s32.totalorder %s125, %s126
      %p138 = scmp.eq.s32.totalorder %s27, 1
      %p139 = por %p137, %p138
      %p141 = scmp.ne.s32.totalorder %s126, %s140
      %p142 = scmp.eq.s32.totalorder %s27, 0
      %p143 = por %p141, %p142
      %s144 = ssub.s32 %s21, %s28
      %p145 = scmp.eq.s32.totalorder %s144, 0
      %s147 = sadd.s32 %s146, 1
      %s148 = scalar_select %p145, %s146, %s147
      %p151 = pneg %p145
      %p152 = scmp.eq.s32.totalorder %s21, 1
      %p153 = por %p151, %p152
      %p154 = scmp.ne.s32.totalorder %s146, %s149
      %p155 = scmp.eq.s32.totalorder %s21, 0
      %p156 = por %p154, %p155
      %p157 = scmp.ne.s32.totalorder %s146, %s149
      %p158 = scmp.eq.s32.totalorder %s26, 1
      %p159 = por %p157, %p158
      %p160 = scmp.ne.s32.totalorder %s149, %s150
      %p161 = scmp.eq.s32.totalorder %s26, 0
      %p162 = por %p160, %p161
      %p163 = scmp.ne.s32.totalorder %s149, %s150
      %p164 = scmp.eq.s32.totalorder %s27, 1
      %p165 = por %p163, %p164
      %p167 = scmp.ne.s32.totalorder %s150, %s166
      %p168 = scmp.eq.s32.totalorder %s27, 0
      %p169 = por %p167, %p168
      %p170 = scmp.le.s32.totalorder 1, %s21
      %p171 = scmp.lt.s32.totalorder %s21, 3
      %p172 = pnand %p170, %p171
      %p173 = pneg %p172
      // Predicated region
      $region9: #{tpu_custom_call.1} parent=5 // pred_check
        _
      $region10: #{tpu_custom_call.1} parent=5 // pred_check_branch
        %175 = sbr.rel (%p172) target = $region12
      $region11: #{tpu_custom_call.1} parent=5 // pred_region
        %s176 = ssub.s32 %s21, 1
        // Predicated region
        $region13: #{tpu_custom_call.1} parent=11 // pred_check
          %p177 = pneg %p94
        $region14: #{tpu_custom_call.1} parent=11 // pred_check_branch
          %179 = sbr.rel (%p177) target = $region16
        $region15: #{tpu_custom_call.1} parent=11 // pred_region
          _
        $region16: #{tpu_custom_call.1} parent=11 // pred_fallthru
          _
        // Predicated region
        $region17: #{tpu_custom_call.1} parent=11 // pred_check
          %p180 = pneg %p115
        $region18: #{tpu_custom_call.1} parent=11 // pred_check_branch
          %182 = sbr.rel (%p180) target = $region20
        $region19: #{tpu_custom_call.1} parent=11 // pred_region
          %s184 = ssub.s32 512, 512
          %185 = vsyncadd [#allocation6], %s184
          %s186 = sshll.u32 [#allocation7], 4
          %s187 = int_to_ptr.vmem [resolvable:$true] %s186
          %192 = dma.hbm_to_vmem [thread:$0]  %s3, 512, %s187, [#allocation6], 64, 64, 4
        $region20: #{tpu_custom_call.1} parent=11 // pred_fallthru
          _
        // Predicated region
        $region21: #{tpu_custom_call.1} parent=11 // pred_check
          %p193 = pneg %p136
        $region22: #{tpu_custom_call.1} parent=11 // pred_check_branch
          %195 = sbr.rel (%p193) target = $region24
        $region23: #{tpu_custom_call.1} parent=11 // pred_region
          %s197 = ssub.s32 512, 512
          %198 = vsyncadd [#allocation9], %s197
          %s199 = sshll.u32 [#allocation8], 4
          %s200 = int_to_ptr.vmem [resolvable:$true] %s199
          %205 = dma.hbm_to_vmem [thread:$0]  %s4, 512, %s200, [#allocation9], 128, 128, 8
        $region24: #{tpu_custom_call.1} parent=11 // pred_fallthru
          _
      $region12: #{tpu_custom_call.1} parent=5 // pred_fallthru
        _
      %p206 = scmp.lt.s32.totalorder %s21, 2
      // Predicated region
      $region25: #{tpu_custom_call.1} parent=5 // pred_check
        %p207 = pneg %p206
      $region26: #{tpu_custom_call.1} parent=5 // pred_check_branch
        %209 = sbr.rel (%p207) target = $region28
      $region27: #{tpu_custom_call.1} parent=5 // pred_region
        // Predicated region
        $region29: #{tpu_custom_call.1} parent=27 // pred_check
          %p210 = pneg %p41
        $region30: #{tpu_custom_call.1} parent=27 // pred_check_branch
          %212 = sbr.rel (%p210) target = $region32
        $region31: #{tpu_custom_call.1} parent=27 // pred_region
          %s213 = sand.u32 %s31, 1
          %s214 = scalar_lea.sflag [#allocation3], %s213
          %s215 = sand.u32 %s31, 1
          %s216 = smul.addr %s215, 16
          %s217 = scalar_lea.vmem [#allocation2], %s216
          %s218 = smul.u32 2, %s21
          %s220 = ssub.s32 256, 256
          %221 = vsyncadd %s214, %s220
          %s222 = smul.addr %s218, 2
          %s223 = smul.addr %s222, 64
          %s224 = scalar_lea.hbm %s0, %s223
          %s225 = sshll.u32 %s217, 4
          %s226 = int_to_ptr.vmem [resolvable:$true] %s225
          %231 = dma.hbm_to_vmem [thread:$0]  %s224, 256, %s226, %s214, 128, 128, 8
        $region32: #{tpu_custom_call.1} parent=27 // pred_fallthru
          _
        // Predicated region
        $region33: #{tpu_custom_call.1} parent=27 // pred_check
          %p232 = pneg %p67
        $region34: #{tpu_custom_call.1} parent=27 // pred_check_branch
          %234 = sbr.rel (%p232) target = $region36
        $region35: #{tpu_custom_call.1} parent=27 // pred_region
          %s235 = sand.u32 %s21, 1
          %s236 = scalar_lea.sflag [#allocation6], %s235
          %s237 = sand.u32 %s57, 1
          %s238 = smul.addr %s237, 16
          %s239 = scalar_lea.vmem [#allocation5], %s238
          %s240 = smul.u32 2, %s21
          %s242 = ssub.s32 256, 256
          %243 = vsyncadd %s236, %s242
          %s244 = smul.addr %s240, 2
          %s245 = smul.addr %s244, 64
          %s246 = scalar_lea.hbm %s1, %s245
          %s247 = sshll.u32 %s239, 4
          %s248 = int_to_ptr.vmem [resolvable:$true] %s247
          %253 = dma.hbm_to_vmem [thread:$0]  %s246, 256, %s248, %s236, 128, 128, 8
        $region36: #{tpu_custom_call.1} parent=27 // pred_fallthru
          _
      $region28: #{tpu_custom_call.1} parent=5 // pred_fallthru
        _
      %p254 = scmp.le.s32.totalorder 1, %s21
      %p255 = scmp.lt.s32.totalorder %s21, 3
      %p256 = pnand %p254, %p255
      %p257 = pneg %p256
      // Predicated region
      $region37: #{tpu_custom_call.1} parent=5 // pred_check
        _
      $region38: #{tpu_custom_call.1} parent=5 // pred_check_branch
        %259 = sbr.rel (%p256) target = $region40
      $region39: #{tpu_custom_call.1} parent=5 // pred_region
        %s260 = ssub.s32 %s21, 1
        %s261 = sand.u32 %s34, 1
        %s262 = scalar_lea.sflag [#allocation3], %s261
        %s263 = sand.u32 %s34, 1
        %s264 = smul.addr %s263, 16
        %s265 = scalar_lea.vmem [#allocation2], %s264
        // Predicated region
        $region41: #{tpu_custom_call.1} parent=39 // pred_check
          %p266 = pneg %p47
        $region42: #{tpu_custom_call.1} parent=39 // pred_check_branch
          %268 = sbr.rel (%p266) target = $region44
        $region43: #{tpu_custom_call.1} parent=39 // pred_region
          %269 = dma.done %s262, 256
        $region44: #{tpu_custom_call.1} parent=39 // pred_fallthru
          _
        %s270 = sand.u32 %s26, 1
        %s271 = scalar_lea.sflag [#allocation6], %s270
        %s272 = sand.u32 %s60, 1
        %s273 = smul.addr %s272, 16
        %s274 = scalar_lea.vmem [#allocation5], %s273
        // Predicated region
        $region45: #{tpu_custom_call.1} parent=39 // pred_check
          %p275 = pneg %p73
        $region46: #{tpu_custom_call.1} parent=39 // pred_check_branch
          %277 = sbr.rel (%p275) target = $region48
        $region47: #{tpu_custom_call.1} parent=39 // pred_region
          %278 = dma.done %s271, 256
        $region48: #{tpu_custom_call.1} parent=39 // pred_fallthru
          _
        // Predicated region
        $region49: #{tpu_custom_call.1} parent=39 // pred_check
          %p279 = pneg %p115
        $region50: #{tpu_custom_call.1} parent=39 // pred_check_branch
          %281 = sbr.rel (%p279) target = $region52
        $region51: #{tpu_custom_call.1} parent=39 // pred_region
          %282 = dma.done [#allocation6], 512
        $region52: #{tpu_custom_call.1} parent=39 // pred_fallthru
          _
        // Predicated region
        $region53: #{tpu_custom_call.1} parent=39 // pred_check
          %p283 = pneg %p136
        $region54: #{tpu_custom_call.1} parent=39 // pred_check_branch
          %285 = sbr.rel (%p283) target = $region56
        $region55: #{tpu_custom_call.1} parent=39 // pred_region
          %286 = dma.done [#allocation9], 512
        $region56: #{tpu_custom_call.1} parent=39 // pred_fallthru
          _
        %s287 = sand.u32 %s34, 1
        %s288 = scalar_lea.sflag [#allocation3], %s287
        %s289 = sand.u32 %s34, 1
        %s290 = smul.addr %s289, 16
        %s291 = scalar_lea.vmem [#allocation2], %s290
        %p292 = pneg %p47
        %p293 = pneg %p44
        %s294 = sand.u32 %s26, 1
        %s295 = scalar_lea.sflag [#allocation6], %s294
        %s296 = sand.u32 %s60, 1
        %s297 = smul.addr %s296, 16
        %s298 = scalar_lea.vmem [#allocation5], %s297
        %p299 = pneg %p73
        %p300 = pneg %p70
        %p301 = pneg %p94
        %p302 = pneg %p91
        %p303 = pneg %p115
        %p304 = pneg %p112
        %p305 = pneg %p136
        %p306 = pneg %p133
        %p307 = pneg %p162
        %p308 = pneg %p159
        %s309 = sand.u32 %s149, 1
        %s310 = scalar_lea.sflag [#allocation4], %s309
        %s311 = sand.u32 %s149, 1
        %s312 = smul.addr %s311, 32
        %s313 = scalar_lea.vmem [#allocation10], %s312
        %s314 = smul.u32 2, %s26
        %s315 = smul.u32 2, %s26
        %s316 = smul.u32 2, %s26
        %v318 = vld [vmem:[#allocation7] sm:$0xf]
        %v319 = vld [vmem:[#allocation7 + $0x4] sm:$0xf]
        %v320 = vld [vmem:[#allocation7 + $0x8] sm:$0x3]
        %v321 = vld [vmem:[#allocation7 + $0x10] sm:$0xf]
        %v322 = vld [vmem:[#allocation7 + $0x18] sm:$0xf]
        %v323 = vld [vmem:[%s2] sm:$0xf]
        %v324 = vld [vmem:[#allocation8] sm:$0xff]
        %v325 = vld [vmem:[#allocation8 + $0x8] sm:$0xff]
        %v326 = vld [vmem:[#allocation8 + $0x10] sm:$0x1]
        %v327 = vld [vmem:[#allocation8 + $0x18] sm:$0xff]
        %v328 = vld [vmem:[%s265] sm:$0xff]
        %v329 = vld [vmem:[%s274] sm:$0xff]
        %331 = vset.pattern.permute.xlu0 0
        %332 = vperm.xlu0 %331, %v324
        %v333 = vpop.permute.xlu0 %332
        %336 = vset.pattern.permute.xlu0 0
        %337 = vperm.xlu0 %336, %v325
        %v338 = vpop.permute.xlu0 %337
        %v342 = vunpack.c.l.b16 %v318
        %v343 = vunpack.c.l.b16 %v319
        %v344 = vpack.c.b16 %v343, %v342
        %v346 = vunpack.c.l.b16 %v328
        %v347 = vunpack.c.h.b16 %v328
        %v348 = vpack.c.b16 %v346, %v346
        %v349 = vpack.c.b16 %v347, %v347
        %vm350 = vcmask 64512
        %v352 = vsel %vm350, %v344, 0
        %vm354 = vcmask 1043456
        %v356 = vsel %vm354, %v348, 0
        %v359 = vsel %vm354, %v349, 0
        %361 = vmatprep.subr.bf16.mxu0 %v359
        %362 = vmatpush1.bf16.msra.mxu0 %v356
        %363 = vmatprep.subr.bf16.mxu0 0
        %364 = vmatpush1.bf16.msra.mxu0 0
        %365 = vmatprep.subr.bf16.mxu0 0
        %366 = vmatpush1.bf16.msra.mxu0 0
        %367 = vmatprep.subr.bf16.mxu0 0
        %368 = vmatpush1.bf16.msra.mxu0 0
        %369 = vmatprep.subr.bf16.mxu0 0
        %370 = vmatpush1.bf16.msra.mxu0 0
        %371 = vmatprep.subr.bf16.mxu0 0
        %372 = vmatpush1.bf16.msra.mxu0 0
        %373 = vmatprep.subr.bf16.mxu0 0
        %374 = vmatpush1.bf16.msra.mxu0 0
        %375 = vmatprep.subr.bf16.mxu0 0
        %376 = vmatpush1.bf16.msra.mxu0 0
        %377 = vmatprep.subr.bf16.mxu0 0
        %378 = vmatpush1.bf16.msra.mxu0 0
        %379 = vmatprep.subr.bf16.mxu0 0
        %380 = vmatpush1.bf16.msra.mxu0 0
        %381 = vmatprep.subr.bf16.mxu0 0
        %382 = vmatpush1.bf16.msra.mxu0 0
        %383 = vmatprep.subr.bf16.mxu0 0
        %384 = vmatpush1.bf16.msra.mxu0 0
        %385 = vmatprep.subr.bf16.mxu0 0
        %386 = vmatpush1.bf16.msra.mxu0 0
        %387 = vmatprep.subr.bf16.mxu0 0
        %388 = vmatpush1.bf16.msra.mxu0 0
        %389 = vmatprep.subr.bf16.mxu0 0
        %390 = vmatpush1.bf16.msra.mxu0 0
        %391 = vmatprep.subr.bf16.mxu0 0
        %392 = vmatpush1.bf16.msra.mxu0 0
        %393 = vmatprep.mubr.bf16.mxu0 0
        %394 = vmatmul.mubr.bf16.gmra.mrb[0].mxu0 %v352
        %v395 = vpop.f32.mrb[0].mxu0
        %v396 = vadd.f32 %v333, %v395
        %v397 = vpop.f32.mrb[0].mxu0
        %v398 = vadd.f32 %v333, %v397
        %v399 = vpop.f32.mrb[0].mxu0
        %v400 = vadd.f32 %v338, %v399
        %v401 = vpop.f32.mrb[0].mxu0
        %v402 = vadd.f32 %v338, %v401
        %403 = vdwg.mxu0
        %v404 = vpack.c.bf16 %v396, %v396
        %v405 = vpack.c.bf16 %v398, %v398
        %v406 = vunpack.c.l.bf16 %v329
        %v407 = vunpack.c.h.bf16 %v329
        %v408 = vmul.f32 %v400, %v406
        %v409 = vmul.f32 %v402, %v407
        %v410 = vpack.c.bf16 %v408, %v408
        %v411 = vpack.c.bf16 %v409, %v409
        %v412 = vpack.c.bf16 %v400, %v400
        %v413 = vpack.c.bf16 %v402, %v402
        %v416 = vunpack.c.l.s4 1983009808
        %v417 = vunpack.c.0.s8 %v416
        %v418 = vlaneseq
        %v419 = vshrl.u32 %v418, 7
        %v420 = vsub.s32 %v417, %v419
        %v421 = vrot.slane %v323, %v420
        %v422 = vcombine.high %v421, %v421
        %425 = vmatprep.subr.bf16.mxu0 %v422
        %426 = vmatpush1.bf16.xpose.msra.mxu0 %v421
        %427 = vmatprep.subr.bf16.mxu0 0
        %428 = vmatpush1.bf16.xpose.msra.mxu0 0
        %429 = vmatprep.subr.bf16.mxu0 0
        %430 = vmatpush1.bf16.xpose.msra.mxu0 0
        %431 = vmatprep.subr.bf16.mxu0 0
        %432 = vmatpush1.bf16.xpose.msra.mxu0 0
        %433 = vmatprep.subr.bf16.mxu0 0
        %434 = vmatpush1.bf16.xpose.msra.mxu0 0
        %435 = vmatprep.subr.bf16.mxu0 0
        %436 = vmatpush1.bf16.xpose.msra.mxu0 0
        %437 = vmatprep.subr.bf16.mxu0 0
        %438 = vmatpush1.bf16.xpose.msra.mxu0 0
        %439 = vmatprep.subr.bf16.mxu0 0
        %440 = vmatpush1.bf16.xpose.msra.mxu0 0
        %441 = vmatprep.subr.bf16.mxu0 0
        %442 = vmatpush1.bf16.xpose.msra.mxu0 0
        %443 = vmatprep.subr.bf16.mxu0 0
        %444 = vmatpush1.bf16.xpose.msra.mxu0 0
        %445 = vmatprep.subr.bf16.mxu0 0
        %446 = vmatpush1.bf16.xpose.msra.mxu0 0
        %447 = vmatprep.subr.bf16.mxu0 0
        %448 = vmatpush1.bf16.xpose.msra.mxu0 0
        %449 = vmatprep.subr.bf16.mxu0 0
        %450 = vmatpush1.bf16.xpose.msra.mxu0 0
        %451 = vmatprep.subr.bf16.mxu0 0
        %452 = vmatpush1.bf16.xpose.msra.mxu0 0
        %453 = vmatprep.subr.bf16.mxu0 0
        %454 = vmatpush1.bf16.xpose.msra.mxu0 0
        %455 = vmatprep.subr.bf16.mxu0 0
        %456 = vmatpush1.bf16.xpose.msra.mxu0 0
        %457 = vmatprep.mubr.bf16.mxu0 %v411
        %458 = vmatmul.mubr.bf16.gmra.mrb[0].mxu0 %v410
        %v459 = vpop.f32.mrb[0].mxu0
        %v460 = vadd.f32 0.0, %v459
        %v461 = vpop.f32.mrb[0].mxu0
        %v462 = vpop.f32.mrb[0].mxu0
        %v463 = vpop.f32.mrb[0].mxu0
        %464 = vdwg.mxu0
        %v465 = vpack.c.bf16 %v460, %v460
        %466 = vxpose.xlu0.c.b16.start [1/8] %v465, 128
        %467 = vxpose.xlu0.c.b16.cont [2/8] 0, 128
        %468 = vxpose.xlu0.c.b16.cont [3/8] 0, 128
        %469 = vxpose.xlu0.c.b16.cont [4/8] 0, 128
        %470 = vxpose.xlu0.c.b16.cont [5/8] 0, 128
        %471 = vxpose.xlu0.c.b16.cont [6/8] 0, 128
        %472 = vxpose.xlu0.c.b16.cont [7/8] 0, 128
        %473 = vxpose.xlu0.c.b16.end [8/8] 0, 128
        %v474 = vpop.trf.xlu0
        %v475 = vpop.trf.xlu0
        %v476 = vpop.trf.xlu0
        %v477 = vpop.trf.xlu0
        %v478 = vpop.trf.xlu0
        %v479 = vpop.trf.xlu0
        %v480 = vpop.trf.xlu0
        %v481 = vpop.trf.xlu0
        %v483 = vsel %vm350, %v474, 0
        %v486 = vsel %vm354, %v412, 0
        %v489 = vsel %vm354, %v413, 0
        %491 = vmatprep.subr.bf16.mxu0 %v489
        %492 = vmatpush1.bf16.msra.mxu0 %v486
        %493 = vmatprep.subr.bf16.mxu0 0
        %494 = vmatpush1.bf16.msra.mxu0 0
        %495 = vmatprep.subr.bf16.mxu0 0
        %496 = vmatpush1.bf16.msra.mxu0 0
        %497 = vmatprep.subr.bf16.mxu0 0
        %498 = vmatpush1.bf16.msra.mxu0 0
        %499 = vmatprep.subr.bf16.mxu0 0
        %500 = vmatpush1.bf16.msra.mxu0 0
        %501 = vmatprep.subr.bf16.mxu0 0
        %502 = vmatpush1.bf16.msra.mxu0 0
        %503 = vmatprep.subr.bf16.mxu0 0
        %504 = vmatpush1.bf16.msra.mxu0 0
        %505 = vmatprep.subr.bf16.mxu0 0
        %506 = vmatpush1.bf16.msra.mxu0 0
        %507 = vmatprep.subr.bf16.mxu0 0
        %508 = vmatpush1.bf16.msra.mxu0 0
        %509 = vmatprep.subr.bf16.mxu0 0
        %510 = vmatpush1.bf16.msra.mxu0 0
        %511 = vmatprep.subr.bf16.mxu0 0
        %512 = vmatpush1.bf16.msra.mxu0 0
        %513 = vmatprep.subr.bf16.mxu0 0
        %514 = vmatpush1.bf16.msra.mxu0 0
        %515 = vmatprep.subr.bf16.mxu0 0
        %516 = vmatpush1.bf16.msra.mxu0 0
        %517 = vmatprep.subr.bf16.mxu0 0
        %518 = vmatpush1.bf16.msra.mxu0 0
        %519 = vmatprep.subr.bf16.mxu0 0
        %520 = vmatpush1.bf16.msra.mxu0 0
        %521 = vmatprep.subr.bf16.mxu0 0
        %522 = vmatpush1.bf16.msra.mxu0 0
        %523 = vmatprep.mubr.bf16.mxu0 0
        %524 = vmatmul.mubr.bf16.gmra.mrb[0].mxu0 %v483
        %v525 = vpop.f32.mrb[0].mxu0
        %v526 = vadd.f32 0.0, %v525
        %v527 = vpop.f32.mrb[0].mxu0
        %v528 = vadd.f32 0.0, %v527
        %v529 = vpop.f32.mrb[0].mxu0
        %v530 = vpop.f32.mrb[0].mxu0
        %531 = vdwg.mxu0
        %v532 = vsel %vm354, %v526, -inf
        %v533 = vrot.slane %v532, 4
        %v534 = vmax.f32 %v532, %v533
        %v535 = vrot.slane %v534, 2
        %v536 = vmax.f32 %v534, %v535
        %v537 = vrot.slane %v536, 1
        %v538 = vmax.f32 %v536, %v537
        %v539 = vsel %vm354, %v528, -inf
        %v540 = vrot.slane %v539, 4
        %v541 = vmax.f32 %v539, %v540
        %v542 = vrot.slane %v541, 2
        %v543 = vmax.f32 %v541, %v542
        %v544 = vrot.slane %v543, 1
        %v545 = vmax.f32 %v543, %v544
        %v546 = vsub.f32 %v526, %v538
        %v547 = vsub.f32 %v528, %v545
        %v548 = vmul.f32 %v546, 1.442695
        %v549 = vpow.pop %v548
        %v550 = vmul.f32 %v547, 1.442695
        %v551 = vpow.pop %v550
        %v552 = vsel %vm354, %v549, 0.0
        %v553 = vrot.slane %v552, 4
        %v554 = vadd.f32 %v552, %v553
        %v555 = vrot.slane %v554, 2
        %v556 = vadd.f32 %v554, %v555
        %v557 = vrot.slane %v556, 1
        %v558 = vadd.f32 %v556, %v557
        %v559 = vsel %vm354, %v551, 0.0
        %v560 = vrot.slane %v559, 4
        %v561 = vadd.f32 %v559, %v560
        %v562 = vrot.slane %v561, 2
        %v563 = vadd.f32 %v561, %v562
        %v564 = vrot.slane %v563, 1
        %v565 = vadd.f32 %v563, %v564
        %v566 = vrcp.pop %v558
        %v567 = vmul.f32 %v549, %v566
        %v568 = vrcp.pop %v565
        %v569 = vmul.f32 %v551, %v568
        %v570 = vpack.c.bf16 %v567, %v567
        %v571 = vpack.c.bf16 %v569, %v569
        %572 = vmatprep.subr.bf16.mxu0 %v571
        %573 = vmatpush1.bf16.xpose.msra.mxu0 %v570
        %574 = vmatprep.subr.bf16.mxu0 0
        %575 = vmatpush1.bf16.xpose.msra.mxu0 0
        %576 = vmatprep.subr.bf16.mxu0 0
        %577 = vmatpush1.bf16.xpose.msra.mxu0 0
        %578 = vmatprep.subr.bf16.mxu0 0
        %579 = vmatpush1.bf16.xpose.msra.mxu0 0
        %580 = vmatprep.subr.bf16.mxu0 0
        %581 = vmatpush1.bf16.xpose.msra.mxu0 0
        %582 = vmatprep.subr.bf16.mxu0 0
        %583 = vmatpush1.bf16.xpose.msra.mxu0 0
        %584 = vmatprep.subr.bf16.mxu0 0
        %585 = vmatpush1.bf16.xpose.msra.mxu0 0
        %586 = vmatprep.subr.bf16.mxu0 0
        %587 = vmatpush1.bf16.xpose.msra.mxu0 0
        %588 = vmatprep.subr.bf16.mxu0 0
        %589 = vmatpush1.bf16.xpose.msra.mxu0 0
        %590 = vmatprep.subr.bf16.mxu0 0
        %591 = vmatpush1.bf16.xpose.msra.mxu0 0
        %592 = vmatprep.subr.bf16.mxu0 0
        %593 = vmatpush1.bf16.xpose.msra.mxu0 0
        %594 = vmatprep.subr.bf16.mxu0 0
        %595 = vmatpush1.bf16.xpose.msra.mxu0 0
        %596 = vmatprep.subr.bf16.mxu0 0
        %597 = vmatpush1.bf16.xpose.msra.mxu0 0
        %598 = vmatprep.subr.bf16.mxu0 0
        %599 = vmatpush1.bf16.xpose.msra.mxu0 0
        %600 = vmatprep.subr.bf16.mxu0 0
        %601 = vmatpush1.bf16.xpose.msra.mxu0 0
        %602 = vmatprep.subr.bf16.mxu0 0
        %603 = vmatpush1.bf16.xpose.msra.mxu0 0
        %604 = vmatprep.mubr.bf16.mxu0 %v405
        %605 = vmatmul.mubr.bf16.gmra.mrb[0].mxu0 %v404
        %v606 = vpop.f32.mrb[0].mxu0
        %v607 = vadd.f32 0.0, %v606
        %v608 = vpop.f32.mrb[0].mxu0
        %v609 = vpop.f32.mrb[0].mxu0
        %v610 = vpop.f32.mrb[0].mxu0
        %611 = vdwg.mxu0
        %s612 = scalar_lea.vmem %s265, 8 [#allocation2]
        %v613 = vld [vmem:[%s612] sm:$0xff]
        %s614 = scalar_lea.vmem %s274, 8 [#allocation5]
        %v615 = vld [vmem:[%s614] sm:$0xff]
        %v617 = vunpack.c.l.b16 %v613
        %v618 = vunpack.c.h.b16 %v613
        %v619 = vpack.c.b16 %v617, %v617
        %v620 = vpack.c.b16 %v618, %v618
        %v622 = vsel %vm354, %v619, 0
        %v625 = vsel %vm354, %v620, 0
        %627 = vmatprep.subr.bf16.mxu0 %v625
        %628 = vmatpush1.bf16.msra.mxu0 %v622
        %629 = vmatprep.subr.bf16.mxu0 0
        %630 = vmatpush1.bf16.msra.mxu0 0
        %631 = vmatprep.subr.bf16.mxu0 0
        %632 = vmatpush1.bf16.msra.mxu0 0
        %633 = vmatprep.subr.bf16.mxu0 0
        %634 = vmatpush1.bf16.msra.mxu0 0
        %635 = vmatprep.subr.bf16.mxu0 0
        %636 = vmatpush1.bf16.msra.mxu0 0
        %637 = vmatprep.subr.bf16.mxu0 0
        %638 = vmatpush1.bf16.msra.mxu0 0
        %639 = vmatprep.subr.bf16.mxu0 0
        %640 = vmatpush1.bf16.msra.mxu0 0
        %641 = vmatprep.subr.bf16.mxu0 0
        %642 = vmatpush1.bf16.msra.mxu0 0
        %643 = vmatprep.subr.bf16.mxu0 0
        %644 = vmatpush1.bf16.msra.mxu0 0
        %645 = vmatprep.subr.bf16.mxu0 0
        %646 = vmatpush1.bf16.msra.mxu0 0
        %647 = vmatprep.subr.bf16.mxu0 0
        %648 = vmatpush1.bf16.msra.mxu0 0
        %649 = vmatprep.subr.bf16.mxu0 0
        %650 = vmatpush1.bf16.msra.mxu0 0
        %651 = vmatprep.subr.bf16.mxu0 0
        %652 = vmatpush1.bf16.msra.mxu0 0
        %653 = vmatprep.subr.bf16.mxu0 0
        %654 = vmatpush1.bf16.msra.mxu0 0
        %655 = vmatprep.subr.bf16.mxu0 0
        %656 = vmatpush1.bf16.msra.mxu0 0
        %657 = vmatprep.subr.bf16.mxu0 0
        %658 = vmatpush1.bf16.msra.mxu0 0
        %659 = vmatprep.mubr.bf16.mxu0 0
        %660 = vmatmul.mubr.bf16.gmra.mrb[0].mxu0 %v352
        %v661 = vpop.f32.mrb[0].mxu0
        %v662 = vadd.f32 %v333, %v661
        %v663 = vpop.f32.mrb[0].mxu0
        %v664 = vadd.f32 %v333, %v663
        %v665 = vpop.f32.mrb[0].mxu0
        %v666 = vadd.f32 %v338, %v665
        %v667 = vpop.f32.mrb[0].mxu0
        %v668 = vadd.f32 %v338, %v667
        %669 = vdwg.mxu0
        %v670 = vpack.c.bf16 %v662, %v662
        %v671 = vpack.c.bf16 %v664, %v664
        %v672 = vunpack.c.l.bf16 %v615
        %v673 = vunpack.c.h.bf16 %v615
        %v674 = vmul.f32 %v666, %v672
        %v675 = vmul.f32 %v668, %v673
        %v676 = vpack.c.bf16 %v674, %v674
        %v677 = vpack.c.bf16 %v675, %v675
        %v678 = vpack.c.bf16 %v666, %v666
        %v679 = vpack.c.bf16 %v668, %v668
        %680 = vmatprep.subr.bf16.mxu0 %v422
        %681 = vmatpush1.bf16.xpose.msra.mxu0 %v421
        %682 = vmatprep.subr.bf16.mxu0 0
        %683 = vmatpush1.bf16.xpose.msra.mxu0 0
        %684 = vmatprep.subr.bf16.mxu0 0
        %685 = vmatpush1.bf16.xpose.msra.mxu0 0
        %686 = vmatprep.subr.bf16.mxu0 0
        %687 = vmatpush1.bf16.xpose.msra.mxu0 0
        %688 = vmatprep.subr.bf16.mxu0 0
        %689 = vmatpush1.bf16.xpose.msra.mxu0 0
        %690 = vmatprep.subr.bf16.mxu0 0
        %691 = vmatpush1.bf16.xpose.msra.mxu0 0
        %692 = vmatprep.subr.bf16.mxu0 0
        %693 = vmatpush1.bf16.xpose.msra.mxu0 0
        %694 = vmatprep.subr.bf16.mxu0 0
        %695 = vmatpush1.bf16.xpose.msra.mxu0 0
        %696 = vmatprep.subr.bf16.mxu0 0
        %697 = vmatpush1.bf16.xpose.msra.mxu0 0
        %698 = vmatprep.subr.bf16.mxu0 0
        %699 = vmatpush1.bf16.xpose.msra.mxu0 0
        %700 = vmatprep.subr.bf16.mxu0 0
        %701 = vmatpush1.bf16.xpose.msra.mxu0 0
        %702 = vmatprep.subr.bf16.mxu0 0
        %703 = vmatpush1.bf16.xpose.msra.mxu0 0
        %704 = vmatprep.subr.bf16.mxu0 0
        %705 = vmatpush1.bf16.xpose.msra.mxu0 0
        %706 = vmatprep.subr.bf16.mxu0 0
        %707 = vmatpush1.bf16.xpose.msra.mxu0 0
        %708 = vmatprep.subr.bf16.mxu0 0
        %709 = vmatpush1.bf16.xpose.msra.mxu0 0
        %710 = vmatprep.subr.bf16.mxu0 0
        %711 = vmatpush1.bf16.xpose.msra.mxu0 0
        %712 = vmatprep.mubr.bf16.mxu0 %v677
        %713 = vmatmul.mubr.bf16.gmra.mrb[0].mxu0 %v676
        %v714 = vpop.f32.mrb[0].mxu0
        %v715 = vadd.f32 0.0, %v714
        %v716 = vpop.f32.mrb[0].mxu0
        %v717 = vpop.f32.mrb[0].mxu0
        %v718 = vpop.f32.mrb[0].mxu0
        %719 = vdwg.mxu0
        %v720 = vpack.c.bf16 %v715, %v715
        %721 = vxpose.xlu0.c.b16.start [1/8] %v720, 128
        %722 = vxpose.xlu0.c.b16.cont [2/8] 0, 128
        %723 = vxpose.xlu0.c.b16.cont [3/8] 0, 128
        %724 = vxpose.xlu0.c.b16.cont [4/8] 0, 128
        %725 = vxpose.xlu0.c.b16.cont [5/8] 0, 128
        %726 = vxpose.xlu0.c.b16.cont [6/8] 0, 128
        %727 = vxpose.xlu0.c.b16.cont [7/8] 0, 128
        %728 = vxpose.xlu0.c.b16.end [8/8] 0, 128
        %v729 = vpop.trf.xlu0
        %v730 = vpop.trf.xlu0
        %v731 = vpop.trf.xlu0
        %v732 = vpop.trf.xlu0
        %v733 = vpop.trf.xlu0
        %v734 = vpop.trf.xlu0
        %v735 = vpop.trf.xlu0
        %v736 = vpop.trf.xlu0
        %v738 = vsel %vm350, %v729, 0
        %v741 = vsel %vm354, %v678, 0
        %v744 = vsel %vm354, %v679, 0
        %746 = vmatprep.subr.bf16.mxu0 %v744
        %747 = vmatpush1.bf16.msra.mxu0 %v741
        %748 = vmatprep.subr.bf16.mxu0 0
        %749 = vmatpush1.bf16.msra.mxu0 0
        %750 = vmatprep.subr.bf16.mxu0 0
        %751 = vmatpush1.bf16.msra.mxu0 0
        %752 = vmatprep.subr.bf16.mxu0 0
        %753 = vmatpush1.bf16.msra.mxu0 0
        %754 = vmatprep.subr.bf16.mxu0 0
        %755 = vmatpush1.bf16.msra.mxu0 0
        %756 = vmatprep.subr.bf16.mxu0 0
        %757 = vmatpush1.bf16.msra.mxu0 0
        %758 = vmatprep.subr.bf16.mxu0 0
        %759 = vmatpush1.bf16.msra.mxu0 0
        %760 = vmatprep.subr.bf16.mxu0 0
        %761 = vmatpush1.bf16.msra.mxu0 0
        %762 = vmatprep.subr.bf16.mxu0 0
        %763 = vmatpush1.bf16.msra.mxu0 0
        %764 = vmatprep.subr.bf16.mxu0 0
        %765 = vmatpush1.bf16.msra.mxu0 0
        %766 = vmatprep.subr.bf16.mxu0 0
        %767 = vmatpush1.bf16.msra.mxu0 0
        %768 = vmatprep.subr.bf16.mxu0 0
        %769 = vmatpush1.bf16.msra.mxu0 0
        %770 = vmatprep.subr.bf16.mxu0 0
        %771 = vmatpush1.bf16.msra.mxu0 0
        %772 = vmatprep.subr.bf16.mxu0 0
        %773 = vmatpush1.bf16.msra.mxu0 0
        %774 = vmatprep.subr.bf16.mxu0 0
        %775 = vmatpush1.bf16.msra.mxu0 0
        %776 = vmatprep.subr.bf16.mxu0 0
        %777 = vmatpush1.bf16.msra.mxu0 0
        %778 = vmatprep.mubr.bf16.mxu0 0
        %779 = vmatmul.mubr.bf16.gmra.mrb[0].mxu0 %v738
        %v780 = vpop.f32.mrb[0].mxu0
        %v781 = vadd.f32 0.0, %v780
        %v782 = vpop.f32.mrb[0].mxu0
        %v783 = vadd.f32 0.0, %v782
        %v784 = vpop.f32.mrb[0].mxu0
        %v785 = vpop.f32.mrb[0].mxu0
        %786 = vdwg.mxu0
        %v787 = vsel %vm354, %v781, -inf
        %v788 = vrot.slane %v787, 4
        %v789 = vmax.f32 %v787, %v788
        %v790 = vrot.slane %v789, 2
        %v791 = vmax.f32 %v789, %v790
        %v792 = vrot.slane %v791, 1
        %v793 = vmax.f32 %v791, %v792
        %v794 = vsel %vm354, %v783, -inf
        %v795 = vrot.slane %v794, 4
        %v796 = vmax.f32 %v794, %v795
        %v797 = vrot.slane %v796, 2
        %v798 = vmax.f32 %v796, %v797
        %v799 = vrot.slane %v798, 1
        %v800 = vmax.f32 %v798, %v799
        %v801 = vsub.f32 %v781, %v793
        %v802 = vsub.f32 %v783, %v800
        %v803 = vmul.f32 %v801, 1.442695
        %v804 = vpow.pop %v803
        %v805 = vmul.f32 %v802, 1.442695
        %v806 = vpow.pop %v805
        %v807 = vsel %vm354, %v804, 0.0
        %v808 = vrot.slane %v807, 4
        %v809 = vadd.f32 %v807, %v808
        %v810 = vrot.slane %v809, 2
        %v811 = vadd.f32 %v809, %v810
        %v812 = vrot.slane %v811, 1
        %v813 = vadd.f32 %v811, %v812
        %v814 = vsel %vm354, %v806, 0.0
        %v815 = vrot.slane %v814, 4
        %v816 = vadd.f32 %v814, %v815
        %v817 = vrot.slane %v816, 2
        %v818 = vadd.f32 %v816, %v817
        %v819 = vrot.slane %v818, 1
        %v820 = vadd.f32 %v818, %v819
        %v821 = vrcp.pop %v813
        %v822 = vmul.f32 %v804, %v821
        %v823 = vrcp.pop %v820
        %v824 = vmul.f32 %v806, %v823
        %v825 = vpack.c.bf16 %v822, %v822
        %v826 = vpack.c.bf16 %v824, %v824
        %827 = vmatprep.subr.bf16.mxu0 %v826
        %828 = vmatpush1.bf16.xpose.msra.mxu0 %v825
        %829 = vmatprep.subr.bf16.mxu0 0
        %830 = vmatpush1.bf16.xpose.msra.mxu0 0
        %831 = vmatprep.subr.bf16.mxu0 0
        %832 = vmatpush1.bf16.xpose.msra.mxu0 0
        %833 = vmatprep.subr.bf16.mxu0 0
        %834 = vmatpush1.bf16.xpose.msra.mxu0 0
        %835 = vmatprep.subr.bf16.mxu0 0
        %836 = vmatpush1.bf16.xpose.msra.mxu0 0
        %837 = vmatprep.subr.bf16.mxu0 0
        %838 = vmatpush1.bf16.xpose.msra.mxu0 0
        %839 = vmatprep.subr.bf16.mxu0 0
        %840 = vmatpush1.bf16.xpose.msra.mxu0 0
        %841 = vmatprep.subr.bf16.mxu0 0
        %842 = vmatpush1.bf16.xpose.msra.mxu0 0
        %843 = vmatprep.subr.bf16.mxu0 0
        %844 = vmatpush1.bf16.xpose.msra.mxu0 0
        %845 = vmatprep.subr.bf16.mxu0 0
        %846 = vmatpush1.bf16.xpose.msra.mxu0 0
        %847 = vmatprep.subr.bf16.mxu0 0
        %848 = vmatpush1.bf16.xpose.msra.mxu0 0
        %849 = vmatprep.subr.bf16.mxu0 0
        %850 = vmatpush1.bf16.xpose.msra.mxu0 0
        %851 = vmatprep.subr.bf16.mxu0 0
        %852 = vmatpush1.bf16.xpose.msra.mxu0 0
        %853 = vmatprep.subr.bf16.mxu0 0
        %854 = vmatpush1.bf16.xpose.msra.mxu0 0
        %855 = vmatprep.subr.bf16.mxu0 0
        %856 = vmatpush1.bf16.xpose.msra.mxu0 0
        %857 = vmatprep.subr.bf16.mxu0 0
        %858 = vmatpush1.bf16.xpose.msra.mxu0 0
        %859 = vmatprep.mubr.bf16.mxu0 %v671
        %860 = vmatmul.mubr.bf16.gmra.mrb[0].mxu0 %v670
        %v861 = vpop.f32.mrb[0].mxu0
        %v862 = vadd.f32 0.0, %v861
        %v863 = vpop.f32.mrb[0].mxu0
        %v864 = vpop.f32.mrb[0].mxu0
        %v865 = vpop.f32.mrb[0].mxu0
        %866 = vdwg.mxu0
        %v867 = vpack.c.bf16 %v862, %v607
        %v868 = vlaneseq
        %v869 = vshrl.u32 %v868, 7
        %v870 = vsub.s32 0, %v869
        %v871 = vrot.slane %v326, %v870
        %vm872 = vcmask 31744
        %v874 = vsel %vm872, %v867, 0
        %v877 = vsel %vm872, %v320, 0
        %879 = vmatprep.subr.bf16.mxu0 0
        %880 = vmatpush1.bf16.xpose.msra.mxu0 %v877
        %881 = vmatprep.subr.bf16.mxu0 0
        %882 = vmatpush1.bf16.xpose.msra.mxu0 0
        %883 = vmatprep.subr.bf16.mxu0 0
        %884 = vmatpush1.bf16.xpose.msra.mxu0 0
        %885 = vmatprep.subr.bf16.mxu0 0
        %886 = vmatpush1.bf16.xpose.msra.mxu0 0
        %887 = vmatprep.subr.bf16.mxu0 0
        %888 = vmatpush1.bf16.xpose.msra.mxu0 0
        %889 = vmatprep.subr.bf16.mxu0 0
        %890 = vmatpush1.bf16.xpose.msra.mxu0 0
        %891 = vmatprep.subr.bf16.mxu0 0
        %892 = vmatpush1.bf16.xpose.msra.mxu0 0
        %893 = vmatprep.subr.bf16.mxu0 0
        %894 = vmatpush1.bf16.xpose.msra.mxu0 0
        %895 = vmatprep.subr.bf16.mxu0 0
        %896 = vmatpush1.bf16.xpose.msra.mxu0 0
        %897 = vmatprep.subr.bf16.mxu0 0
        %898 = vmatpush1.bf16.xpose.msra.mxu0 0
        %899 = vmatprep.subr.bf16.mxu0 0
        %900 = vmatpush1.bf16.xpose.msra.mxu0 0
        %901 = vmatprep.subr.bf16.mxu0 0
        %902 = vmatpush1.bf16.xpose.msra.mxu0 0
        %903 = vmatprep.subr.bf16.mxu0 0
        %904 = vmatpush1.bf16.xpose.msra.mxu0 0
        %905 = vmatprep.subr.bf16.mxu0 0
        %906 = vmatpush1.bf16.xpose.msra.mxu0 0
        %907 = vmatprep.subr.bf16.mxu0 0
        %908 = vmatpush1.bf16.xpose.msra.mxu0 0
        %909 = vmatprep.subr.bf16.mxu0 0
        %910 = vmatpush1.bf16.xpose.msra.mxu0 0
        %911 = vmatprep.mubr.bf16.mxu0 0
        %912 = vmatmul.mubr.bf16.gmra.mrb[0].mxu0 %v874
        %v913 = vpop.f32.mrb[0].mxu0
        %v914 = vadd.f32 %v871, %v913
        %v915 = vpop.f32.mrb[0].mxu0
        %v916 = vpop.f32.mrb[0].mxu0
        %v917 = vadd.f32 %v871, %v916
        %v918 = vpop.f32.mrb[0].mxu0
        %919 = vdwg.mxu0
        %v920 = vsub.f32 %v914, %v607
        %v921 = vsub.f32 %v917, %v862
        %923 = vrot.lane.b32.xlu0 %v921, 4
        %v924 = vpop.permute.xlu0 %923
        %v926 = vsel %vm872, %v920, %v924
        %v927 = vpack.c.bf16 %v926, %v926
        %v929 = vsel %vm350, %v321, 0
        %v932 = vsel %vm354, %v927, 0
        %934 = vmatprep.subr.bf16.mxu0 0
        %935 = vmatpush1.bf16.msra.mxu0 %v932
        %936 = vmatprep.subr.bf16.mxu0 0
        %937 = vmatpush1.bf16.msra.mxu0 0
        %938 = vmatprep.subr.bf16.mxu0 0
        %939 = vmatpush1.bf16.msra.mxu0 0
        %940 = vmatprep.subr.bf16.mxu0 0
        %941 = vmatpush1.bf16.msra.mxu0 0
        %942 = vmatprep.subr.bf16.mxu0 0
        %943 = vmatpush1.bf16.msra.mxu0 0
        %944 = vmatprep.subr.bf16.mxu0 0
        %945 = vmatpush1.bf16.msra.mxu0 0
        %946 = vmatprep.subr.bf16.mxu0 0
        %947 = vmatpush1.bf16.msra.mxu0 0
        %948 = vmatprep.subr.bf16.mxu0 0
        %949 = vmatpush1.bf16.msra.mxu0 0
        %950 = vmatprep.subr.bf16.mxu0 0
        %951 = vmatpush1.bf16.msra.mxu0 0
        %952 = vmatprep.subr.bf16.mxu0 0
        %953 = vmatpush1.bf16.msra.mxu0 0
        %954 = vmatprep.subr.bf16.mxu0 0
        %955 = vmatpush1.bf16.msra.mxu0 0
        %956 = vmatprep.subr.bf16.mxu0 0
        %957 = vmatpush1.bf16.msra.mxu0 0
        %958 = vmatprep.subr.bf16.mxu0 0
        %959 = vmatpush1.bf16.msra.mxu0 0
        %960 = vmatprep.subr.bf16.mxu0 0
        %961 = vmatpush1.bf16.msra.mxu0 0
        %962 = vmatprep.subr.bf16.mxu0 0
        %963 = vmatpush1.bf16.msra.mxu0 0
        %964 = vmatprep.subr.bf16.mxu0 0
        %965 = vmatpush1.bf16.msra.mxu0 0
        %966 = vmatprep.mubr.bf16.mxu0 0
        %967 = vmatmul.mubr.bf16.gmra.mrb[0].mxu0 %v929
        %v968 = vpop.f32.mrb[0].mxu0
        %v969 = vadd.f32 0.0, %v968
        %v970 = vpop.f32.mrb[0].mxu0
        %v971 = vpop.f32.mrb[0].mxu0
        %v972 = vpop.f32.mrb[0].mxu0
        %973 = vdwg.mxu0
        %v974 = vmax.f32 %v969, 0.0
        %v975 = vpack.c.bf16 %v974, %v974
        %v977 = vsel %vm872, %v975, 0
        %vm979 = vcmask 1041408
        %v981 = vsel %vm979, %v570, 0
        %v984 = vsel %vm979, %v571, 0
        %986 = vmatprep.subr.bf16.mxu0 %v984
        %987 = vmatpush1.bf16.msra.mxu0 %v981
        %988 = vmatprep.subr.bf16.mxu0 0
        %989 = vmatpush1.bf16.msra.mxu0 0
        %990 = vmatprep.subr.bf16.mxu0 0
        %991 = vmatpush1.bf16.msra.mxu0 0
        %992 = vmatprep.subr.bf16.mxu0 0
        %993 = vmatpush1.bf16.msra.mxu0 0
        %994 = vmatprep.subr.bf16.mxu0 0
        %995 = vmatpush1.bf16.msra.mxu0 0
        %996 = vmatprep.subr.bf16.mxu0 0
        %997 = vmatpush1.bf16.msra.mxu0 0
        %998 = vmatprep.subr.bf16.mxu0 0
        %999 = vmatpush1.bf16.msra.mxu0 0
        %1000 = vmatprep.subr.bf16.mxu0 0
        %1001 = vmatpush1.bf16.msra.mxu0 0
        %1002 = vmatprep.subr.bf16.mxu0 0
        %1003 = vmatpush1.bf16.msra.mxu0 0
        %1004 = vmatprep.subr.bf16.mxu0 0
        %1005 = vmatpush1.bf16.msra.mxu0 0
        %1006 = vmatprep.subr.bf16.mxu0 0
        %1007 = vmatpush1.bf16.msra.mxu0 0
        %1008 = vmatprep.subr.bf16.mxu0 0
        %1009 = vmatpush1.bf16.msra.mxu0 0
        %1010 = vmatprep.subr.bf16.mxu0 0
        %1011 = vmatpush1.bf16.msra.mxu0 0
        %1012 = vmatprep.subr.bf16.mxu0 0
        %1013 = vmatpush1.bf16.msra.mxu0 0
        %1014 = vmatprep.subr.bf16.mxu0 0
        %1015 = vmatpush1.bf16.msra.mxu0 0
        %1016 = vmatprep.subr.bf16.mxu0 0
        %1017 = vmatpush1.bf16.msra.mxu0 0
        %1018 = vmatprep.mubr.bf16.mxu0 0
        %1019 = vmatmul.mubr.bf16.gmra.mrb[0].mxu0 %v977
        %v1020 = vpop.f32.mrb[0].mxu0
        %v1021 = vadd.f32 0.0, %v1020
        %v1022 = vpop.f32.mrb[0].mxu0
        %v1023 = vadd.f32 0.0, %v1022
        %v1024 = vpop.f32.mrb[0].mxu0
        %v1025 = vpop.f32.mrb[0].mxu0
        %1026 = vdwg.mxu0
        %v1027 = vpack.c.bf16 %v1021, %v1021
        %v1028 = vpack.c.bf16 %v1023, %v1023
        %v1030 = vsel %vm350, %v322, 0
        %v1033 = vsel %vm354, %v1027, 0
        %v1036 = vsel %vm354, %v1028, 0
        %1038 = vmatprep.subr.bf16.mxu0 %v1036
        %1039 = vmatpush1.bf16.msra.mxu0 %v1033
        %1040 = vmatprep.subr.bf16.mxu0 0
        %1041 = vmatpush1.bf16.msra.mxu0 0
        %1042 = vmatprep.subr.bf16.mxu0 0
        %1043 = vmatpush1.bf16.msra.mxu0 0
        %1044 = vmatprep.subr.bf16.mxu0 0
        %1045 = vmatpush1.bf16.msra.mxu0 0
        %1046 = vmatprep.subr.bf16.mxu0 0
        %1047 = vmatpush1.bf16.msra.mxu0 0
        %1048 = vmatprep.subr.bf16.mxu0 0
        %1049 = vmatpush1.bf16.msra.mxu0 0
        %1050 = vmatprep.subr.bf16.mxu0 0
        %1051 = vmatpush1.bf16.msra.mxu0 0
        %1052 = vmatprep.subr.bf16.mxu0 0
        %1053 = vmatpush1.bf16.msra.mxu0 0
        %1054 = vmatprep.subr.bf16.mxu0 0
        %1055 = vmatpush1.bf16.msra.mxu0 0
        %1056 = vmatprep.subr.bf16.mxu0 0
        %1057 = vmatpush1.bf16.msra.mxu0 0
        %1058 = vmatprep.subr.bf16.mxu0 0
        %1059 = vmatpush1.bf16.msra.mxu0 0
        %1060 = vmatprep.subr.bf16.mxu0 0
        %1061 = vmatpush1.bf16.msra.mxu0 0
        %1062 = vmatprep.subr.bf16.mxu0 0
        %1063 = vmatpush1.bf16.msra.mxu0 0
        %1064 = vmatprep.subr.bf16.mxu0 0
        %1065 = vmatpush1.bf16.msra.mxu0 0
        %1066 = vmatprep.subr.bf16.mxu0 0
        %1067 = vmatpush1.bf16.msra.mxu0 0
        %1068 = vmatprep.subr.bf16.mxu0 0
        %1069 = vmatpush1.bf16.msra.mxu0 0
        %1070 = vmatprep.mubr.bf16.mxu0 0
        %1071 = vmatmul.mubr.bf16.gmra.mrb[0].mxu0 %v1030
        %v1072 = vpop.f32.mrb[0].mxu0
        %v1073 = vadd.f32 0.0, %v1072
        %v1074 = vpop.f32.mrb[0].mxu0
        %v1075 = vadd.f32 0.0, %v1074
        %v1076 = vpop.f32.mrb[0].mxu0
        %v1077 = vpop.f32.mrb[0].mxu0
        %1078 = vdwg.mxu0
        %1080 = vset.pattern.permute.xlu0 0
        %1081 = vperm.xlu0 %1080, %v327
        %v1082 = vpop.permute.xlu0 %1081
        %v1084 = vmul.f32 %v1073, %v1082
        %v1085 = vmul.f32 %v1075, %v1082
        %1086 = vset.pattern.permute.xlu0 1
        %1087 = vperm.xlu0 %1086, %v327
        %v1088 = vpop.permute.xlu0 %1087
        %v1090 = vadd.f32 %v1084, %v1088
        %v1091 = vadd.f32 %v1085, %v1088
        %v1092 = vunpack.c.l.bf16 %v328
        %v1093 = vunpack.c.h.bf16 %v328
        %v1094 = vadd.f32 %v1092, %v1090
        %v1095 = vadd.f32 %v1093, %v1091
        %1096 = vst [vmem:[%s313] sm:$0xff] %v1094
        %1097 = vst [vmem:[%s313 + $0x8] sm:$0xff] %v1095
        %1099 = vrot.lane.b32.xlu0 %v975, 124
        %v1100 = vpop.permute.xlu0 %1099
        %v1102 = vsel %vm872, %v1100, 0
        %v1105 = vsel %vm979, %v825, 0
        %v1108 = vsel %vm979, %v826, 0
        %1110 = vmatprep.subr.bf16.mxu0 %v1108
        %1111 = vmatpush1.bf16.msra.mxu0 %v1105
        %1112 = vmatprep.subr.bf16.mxu0 0
        %1113 = vmatpush1.bf16.msra.mxu0 0
        %1114 = vmatprep.subr.bf16.mxu0 0
        %1115 = vmatpush1.bf16.msra.mxu0 0
        %1116 = vmatprep.subr.bf16.mxu0 0
        %1117 = vmatpush1.bf16.msra.mxu0 0
        %1118 = vmatprep.subr.bf16.mxu0 0
        %1119 = vmatpush1.bf16.msra.mxu0 0
        %1120 = vmatprep.subr.bf16.mxu0 0
        %1121 = vmatpush1.bf16.msra.mxu0 0
        %1122 = vmatprep.subr.bf16.mxu0 0
        %1123 = vmatpush1.bf16.msra.mxu0 0
        %1124 = vmatprep.subr.bf16.mxu0 0
        %1125 = vmatpush1.bf16.msra.mxu0 0
        %1126 = vmatprep.subr.bf16.mxu0 0
        %1127 = vmatpush1.bf16.msra.mxu0 0
        %1128 = vmatprep.subr.bf16.mxu0 0
        %1129 = vmatpush1.bf16.msra.mxu0 0
        %1130 = vmatprep.subr.bf16.mxu0 0
        %1131 = vmatpush1.bf16.msra.mxu0 0
        %1132 = vmatprep.subr.bf16.mxu0 0
        %1133 = vmatpush1.bf16.msra.mxu0 0
        %1134 = vmatprep.subr.bf16.mxu0 0
        %1135 = vmatpush1.bf16.msra.mxu0 0
        %1136 = vmatprep.subr.bf16.mxu0 0
        %1137 = vmatpush1.bf16.msra.mxu0 0
        %1138 = vmatprep.subr.bf16.mxu0 0
        %1139 = vmatpush1.bf16.msra.mxu0 0
        %1140 = vmatprep.subr.bf16.mxu0 0
        %1141 = vmatpush1.bf16.msra.mxu0 0
        %1142 = vmatprep.mubr.bf16.mxu0 0
        %1143 = vmatmul.mubr.bf16.gmra.mrb[0].mxu0 %v1102
        %v1144 = vpop.f32.mrb[0].mxu0
        %v1145 = vadd.f32 0.0, %v1144
        %v1146 = vpop.f32.mrb[0].mxu0
        %v1147 = vadd.f32 0.0, %v1146
        %v1148 = vpop.f32.mrb[0].mxu0
        %v1149 = vpop.f32.mrb[0].mxu0
        %1150 = vdwg.mxu0
        %v1151 = vpack.c.bf16 %v1145, %v1145
        %v1152 = vpack.c.bf16 %v1147, %v1147
        %v1154 = vsel %vm354, %v1151, 0
        %v1157 = vsel %vm354, %v1152, 0
        %1159 = vmatprep.subr.bf16.mxu0 %v1157
        %1160 = vmatpush1.bf16.msra.mxu0 %v1154
        %1161 = vmatprep.subr.bf16.mxu0 0
        %1162 = vmatpush1.bf16.msra.mxu0 0
        %1163 = vmatprep.subr.bf16.mxu0 0
        %1164 = vmatpush1.bf16.msra.mxu0 0
        %1165 = vmatprep.subr.bf16.mxu0 0
        %1166 = vmatpush1.bf16.msra.mxu0 0
        %1167 = vmatprep.subr.bf16.mxu0 0
        %1168 = vmatpush1.bf16.msra.mxu0 0
        %1169 = vmatprep.subr.bf16.mxu0 0
        %1170 = vmatpush1.bf16.msra.mxu0 0
        %1171 = vmatprep.subr.bf16.mxu0 0
        %1172 = vmatpush1.bf16.msra.mxu0 0
        %1173 = vmatprep.subr.bf16.mxu0 0
        %1174 = vmatpush1.bf16.msra.mxu0 0
        %1175 = vmatprep.subr.bf16.mxu0 0
        %1176 = vmatpush1.bf16.msra.mxu0 0
        %1177 = vmatprep.subr.bf16.mxu0 0
        %1178 = vmatpush1.bf16.msra.mxu0 0
        %1179 = vmatprep.subr.bf16.mxu0 0
        %1180 = vmatpush1.bf16.msra.mxu0 0
        %1181 = vmatprep.subr.bf16.mxu0 0
        %1182 = vmatpush1.bf16.msra.mxu0 0
        %1183 = vmatprep.subr.bf16.mxu0 0
        %1184 = vmatpush1.bf16.msra.mxu0 0
        %1185 = vmatprep.subr.bf16.mxu0 0
        %1186 = vmatpush1.bf16.msra.mxu0 0
        %1187 = vmatprep.subr.bf16.mxu0 0
        %1188 = vmatpush1.bf16.msra.mxu0 0
        %1189 = vmatprep.subr.bf16.mxu0 0
        %1190 = vmatpush1.bf16.msra.mxu0 0
        %1191 = vmatprep.mubr.bf16.mxu0 0
        %1192 = vmatmul.mubr.bf16.gmra.mrb[0].mxu0 %v1030
        %v1193 = vpop.f32.mrb[0].mxu0
        %v1194 = vadd.f32 0.0, %v1193
        %v1195 = vpop.f32.mrb[0].mxu0
        %v1196 = vadd.f32 0.0, %v1195
        %v1197 = vpop.f32.mrb[0].mxu0
        %v1198 = vpop.f32.mrb[0].mxu0
        %1199 = vdwg.mxu0
        %v1200 = vmul.f32 %v1194, %v1082
        %v1201 = vmul.f32 %v1196, %v1082
        %v1202 = vadd.f32 %v1200, %v1088
        %v1203 = vadd.f32 %v1201, %v1088
        %v1204 = vld [vmem:[%s612] sm:$0xff]
        %v1205 = vunpack.c.l.bf16 %v1204
        %v1206 = vunpack.c.h.bf16 %v1204
        %v1207 = vadd.f32 %v1205, %v1202
        %v1208 = vadd.f32 %v1206, %v1203
        %s1209 = scalar_lea.vmem %s313, 16 [#allocation10]
        %1210 = vst [vmem:[%s1209] sm:$0xff] %v1207
        %1211 = vst [vmem:[%s1209 + $0x8] sm:$0xff] %v1208
        %s1212 = sand.u32 %s149, 1
        %s1213 = scalar_lea.sflag [#allocation4], %s1212
        %s1214 = sand.u32 %s149, 1
        %s1215 = smul.addr %s1214, 32
        %s1216 = scalar_lea.vmem [#allocation10], %s1215
        // Predicated region
        $region57: #{tpu_custom_call.1} parent=39 // pred_check
          %p1217 = pneg %p159
        $region58: #{tpu_custom_call.1} parent=39 // pred_check_branch
          %1219 = sbr.rel (%p1217) target = $region60
        $region59: #{tpu_custom_call.1} parent=39 // pred_region
          %s1220 = smul.u32 2, %s26
          %s1222 = ssub.s32 512, 512
          %1223 = vsyncadd %s1213, %s1222
          %s1224 = smul.addr %s1220, 2
          %s1225 = smul.addr %s1224, 128
          %s1226 = scalar_lea.hbm %s5, %s1225
          %s1227 = sshll.u32 %s1216, 4
          %s1228 = int_to_ptr.vmem [resolvable:$true] %s1227
          %1233 = dma.vmem_to_hbm [thread:$0]  %s1228, 512, %s1226, %s1213, 256, 256, 16
        $region60: #{tpu_custom_call.1} parent=39 // pred_fallthru
          _
      $region40: #{tpu_custom_call.1} parent=5 // pred_fallthru
        _
      %p1234 = scmp.le.s32.totalorder 2, %s21
      // Predicated region
      $region61: #{tpu_custom_call.1} parent=5 // pred_check
        %p1235 = pneg %p1234
      $region62: #{tpu_custom_call.1} parent=5 // pred_check_branch
        %1237 = sbr.rel (%p1235) target = $region64
      $region63: #{tpu_custom_call.1} parent=5 // pred_region
        %s1238 = ssub.s32 %s21, 2
        // Predicated region
        $region65: #{tpu_custom_call.1} parent=63 // pred_check
          %p1239 = pneg %p165
        $region66: #{tpu_custom_call.1} parent=63 // pred_check_branch
          %1241 = sbr.rel (%p1239) target = $region68
        $region67: #{tpu_custom_call.1} parent=63 // pred_region
          %s1242 = sand.u32 %s150, 1
          %s1243 = scalar_lea.sflag [#allocation4], %s1242
          %s1244 = sand.u32 %s150, 1
          %s1245 = smul.addr %s1244, 32
          %s1246 = scalar_lea.vmem [#allocation10], %s1245
          %1247 = dma.done %s1243, 512
        $region68: #{tpu_custom_call.1} parent=63 // pred_fallthru
          _
      $region64: #{tpu_custom_call.1} parent=5 // pred_fallthru
        _
    $region6: #{tpu_custom_call.1} parent=1 // loop_footer
      %s25 = sadd.s32 1, %s21
    $region7: #{tpu_custom_call.1} parent=1 // loop_footer_branch
      %20 = sbr.rel target = $region3
    $region8: #{tpu_custom_call.1} parent=1 // loop_exit
      _
    %1248 = vsyncpa [#allocation3], 1
    %s1249 = scalar_lea.sflag [#allocation3], 1
    %1250 = vsyncpa %s1249, 1
    %1251 = vsyncpa [#allocation6], 1
    %s1252 = scalar_lea.sflag [#allocation6], 1
    %1253 = vsyncpa %s1252, 1
    %1254 = vsyncpa [#allocation9], 1
    %1255 = vsyncpa [#allocation4], 1
    %s1256 = scalar_lea.sflag [#allocation4], 1
    %1257 = vsyncpa %s1256, 1

</llo_original>
